<compile_context>
chip_gen: v6e
topology: v6e:2x2x1
jax: 0.10.0
libtpu: 0.0.40
codegen_flags: <defaults>
</compile_context>

<pallas_src>
import functools
import math

import jax
import jax.numpy as jnp
from jax import lax
from jax.experimental import pallas as pl
from jax.experimental.pallas import tpu as pltpu


_LANES = 128
_SUBLANE_BY_ITEMSIZE = {4: 8, 2: 16, 1: 32}


def _round_up(a, m):
    return ((a + m - 1) // m) * m


def _vmem_config():
    """Returns (x_block_budget_bytes_f32equiv, vmem_limit_bytes), per generation."""
    try:
        vmem_phys = int(pltpu.get_tpu_info().vmem_capacity_bytes)
    except Exception:
        vmem_phys = 64 * 1024 * 1024            # assume smallest (v7x per-TC VMEM)
    if vmem_phys >= 100 * 1024 * 1024:          # v5e / v6e: 128 MiB physical VMEM
        return 6 * 1024 * 1024, 64 * 1024 * 1024
    # v7x: 64 MiB physical VMEM; higher HBM BW still wants ~4 MiB blocks.
    return 4 * 1024 * 1024, 40 * 1024 * 1024


def _layernorm_row_kernel(x_ref, w_ref, b_ref, o_ref, *, eps):
    """One logical row per physical row: normalize over the whole last axis.

    NOTE: the last row-block may be ragged; Pallas pads it with unspecified
    rows.  Rows are independent and the padded rows are never written back to
    the valid output region, so their garbage statistics are harmless.  Do not
    add any cross-row reduction here without masking those rows.
    """
    x = x_ref[...].astype(jnp.float32)              # (tr, D)
    w = w_ref[...].astype(jnp.float32)              # (1, D)
    b = b_ref[...].astype(jnp.float32)              # (1, D)
    mean = jnp.mean(x, axis=-1, keepdims=True)
    centered = x - mean
    var = jnp.mean(centered * centered, axis=-1, keepdims=True)  # biased, like PyTorch
    y = centered * lax.rsqrt(var + eps)
    o_ref[...] = (y * w + b).astype(o_ref.dtype)


def _layernorm_packed_kernel(x_ref, w_ref, b_ref, ssum_ref, sbc_ref, o_ref, *, eps):
    """`pack` logical rows folded into each 128-lane-multiple physical row.

    Lane j of a physical row holds feature (j % d) of logical row (j // d).
    The segmented mean/variance reduction runs on the (otherwise idle) MXU:
        seg  = x @ ssum      where ssum[j, p] = (j // d == p) / d   -> per-segment mean
        mean = seg @ sbc     where sbc[p, j]  = (j // d == p)       -> broadcast back
    keeping the VPU/XLU free for the elementwise work (this kernel is HBM-bound).
    Precision.HIGHEST keeps ~f32 accuracy for the f32 operands.
    Ragged last row-block caveat: same as _layernorm_row_kernel.
    """
    hp = lax.Precision.HIGHEST
    x = x_ref[...].astype(jnp.float32)              # (tr, dp)
    w = w_ref[...].astype(jnp.float32)              # (1, dp), weight tiled per segment
    b = b_ref[...].astype(jnp.float32)
    ssum = ssum_ref[...]                            # (dp, pack_p) f32
    sbc = sbc_ref[...]                              # (pack_p, dp) f32

    # Pass 1: per-segment mean (MXU), broadcast back onto the segment lanes (MXU).
    seg_mean = jnp.dot(x, ssum, preferred_element_type=jnp.float32, precision=hp)
    mean = jnp.dot(seg_mean, sbc, preferred_element_type=jnp.float32, precision=hp)
    centered = x - mean

    # Pass 2: per-segment biased variance of centered values (two-pass, matches PyTorch).
    seg_var = jnp.dot(centered * centered, ssum,
                      preferred_element_type=jnp.float32, precision=hp)
    var = jnp.dot(seg_var, sbc, preferred_element_type=jnp.float32, precision=hp)

    y = centered * lax.rsqrt(var + eps)
    o_ref[...] = (y * w + b).astype(o_ref.dtype)


def layer_norm_super(x, weight, bias, sample_normalized_dim, eps=1e-5):
    """Pallas equivalent of LayerNormSuper.forward after set_sample_config."""
    d = int(sample_normalized_dim)
    assert x.shape[-1] == d, "last dim of x must equal sample_normalized_dim"

    # Parameter sampling (glue; mirrors set_sample_config slicing).
    w = weight[:d].astype(jnp.float32)
    b = bias[:d].astype(jnp.float32)

    orig_shape = x.shape
    r = math.prod(orig_shape[:-1])
    x2d = x.reshape(r, d)

    # --- Lane-dense packing for D < 128 -------------------------------------
    # Fold `pack` logical rows per physical row so the stored row width is a
    # multiple of 128 lanes (full vst instead of masked vst.msk partial stores).
    pack = 1
    if 1 < d < _LANES:
        p = math.lcm(d, _LANES) // d
        if p <= 32:
            pack = p
    # TODO(synk): d > 128 and not a multiple of 128 keeps the plain path (masked
    # tail stores); could also be lcm-packed if such sampled configs show up.

    if pack > 1:
        r_pad = _round_up(r, pack)
        if r_pad != r:
            # Zero pad rows: LayerNorm of a zero row stays finite (var=0, eps>0);
            # padded rows are sliced off below.
            x2d = jnp.pad(x2d, ((0, r_pad - r), (0, 0)))
        rp, dp = r_pad // pack, d * pack
        xp = x2d.reshape(rp, dp)                 # free: same row-major buffer
        wp = jnp.tile(w, pack).reshape(1, dp)
        bp = jnp.tile(b, pack).reshape(1, dp)
    else:
        rp, dp = r, d
        xp = x2d
        wp = w.reshape(1, dp)
        bp = b.reshape(1, dp)

    # --- Row-tile selection --------------------------------------------------
    block_budget_f32, vmem_limit = _vmem_config()
    itemsize = jnp.dtype(x.dtype).itemsize
    sublane = _SUBLANE_BY_ITEMSIZE.get(itemsize, 8)
    row_bytes_f32 = dp * 4                       # kernel temporaries are f32
    # Byte-budgeted row tile; no fixed row cap (pure-bandwidth kernel: block
    # bytes is the main lever).
    tr = max((block_budget_f32 // row_bytes_f32) // sublane * sublane, sublane)
    # Prefer >= 4 grid steps for pipelining, but never below ~1 MiB blocks.
    tr_1mib = max(((1 << 20) // row_bytes_f32) // sublane * sublane, sublane)
    tr_4steps = _round_up(-(-rp // 4), sublane)
    tr = min(tr, max(tr_4steps, tr_1mib))
    # Clamp to the available rows.
    tr = max(min(tr, _round_up(rp, sublane)), sublane)
    # v7x megacore: ensure >= 2 grid steps (one per TensorCore) when rows allow.
    if -(-rp // tr) == 1 and rp >= 2 * sublane:
        tr = max(_round_up(-(-rp // 2), sublane), sublane)

    grid = (pl.cdiv(rp, tr),)

    x_spec = pl.BlockSpec((tr, dp), lambda i: (i, 0))
    vec_spec = pl.BlockSpec((1, dp), lambda i: (0, 0))
    out_spec = pl.BlockSpec((tr, dp), lambda i: (i, 0))

    if pack > 1:
        pack_p = _round_up(pack, 8)              # sublane-friendly segment axis
        seg_id = jnp.arange(dp, dtype=jnp.int32) // d
        one_hot = (seg_id[:, None] ==
                   jnp.arange(pack_p, dtype=jnp.int32)[None, :]).astype(jnp.float32)
        ssum = one_hot * jnp.float32(1.0 / d)    # (dp, pack_p): segmented-mean weights
        sbc = one_hot.T                          # (pack_p, dp): broadcast-back one-hots
        kernel = functools.partial(_layernorm_packed_kernel, eps=eps)
        in_specs = [x_spec, vec_spec, vec_spec,
                    pl.BlockSpec((dp, pack_p), lambda i: (0, 0)),
                    pl.BlockSpec((pack_p, dp), lambda i: (0, 0))]
        operands = (xp, wp, bp, ssum, sbc)
    else:
        kernel = functools.partial(_layernorm_row_kernel, eps=eps)
        in_specs = [x_spec, vec_spec, vec_spec]
        operands = (xp, wp, bp)

    out2d = pl.pallas_call(
        kernel,
        out_shape=jax.ShapeDtypeStruct((rp, dp), x.dtype),
        grid_spec=pltpu.PrefetchScalarGridSpec(
            num_scalar_prefetch=0,
            grid=grid,
            in_specs=in_specs,
            out_specs=out_spec,
        ),
        compiler_params=pltpu.CompilerParams(
            dimension_semantics=("parallel",),
            vmem_limit_bytes=vmem_limit,
        ),
    )(*operands)

    return out2d.reshape(-1, d)[:r].reshape(orig_shape)


def _reference(x, weight, bias, d, eps):
    w = weight[:d]
    b = bias[:d]
    xf = x.astype(jnp.float32)
    mean = jnp.mean(xf, axis=-1, keepdims=True)
    var = jnp.mean((xf - mean) ** 2, axis=-1, keepdims=True)
    return ((xf - mean) / jnp.sqrt(var + eps) * w + b).astype(x.dtype)


if __name__ == "__main__":
    key = jax.random.PRNGKey(0)
    k1, k2, k3 = jax.random.split(key, 3)

    # Case 1: sampled dim 32 (< 128) -> lane-dense packed path, pack = 4.
    # LayerNormSuper(64).set_sample_config(32); x: (batch=2, seq=16, hidden=32).
    nd1, sd1 = 64, 32
    idx1 = jnp.arange(nd1, dtype=jnp.float32)
    w1 = jnp.ones((nd1,), jnp.float32) + 0.01 * idx1
    b1 = jnp.zeros((nd1,), jnp.float32) + 0.001 * idx1
    x1 = jax.random.normal(k1, (2, 16, sd1), dtype=jnp.float32)
    out1 = jax.block_until_ready(layer_norm_super(x1, w1, b1, sd1, eps=1e-5))
    ref1 = _reference(x1, w1, b1, sd1, 1e-5)
    assert out1.shape == x1.shape
    assert jnp.allclose(out1, ref1, atol=2e-5, rtol=2e-5)

    # Case 2: sampled dim 128 -> plain (already lane-dense) row path, >= 2 grid steps.
    # LayerNormSuper(256).set_sample_config(128); x: (batch=2, seq=8, hidden=128).
    nd2, sd2 = 256, 128
    idx2 = jnp.arange(nd2, dtype=jnp.float32)
    w2 = jnp.ones((nd2,), jnp.float32) + 0.01 * idx2
    b2 = jnp.zeros((nd2,), jnp.float32) + 0.001 * idx2
    x2 = jax.random.normal(k2, (2, 8, sd2), dtype=jnp.float32)
    out2 = jax.block_until_ready(layer_norm_super(x2, w2, b2, sd2, eps=1e-5))
    ref2 = _reference(x2, w2, b2, sd2, 1e-5)
    assert out2.shape == x2.shape
    assert jnp.allclose(out2, ref2, atol=2e-5, rtol=2e-5)

    # Case 3: sampled dim 48 (not a divisor of 128) with a row count that is not
    # a multiple of pack -> exercises lcm packing (pack = 8) + row zero-padding.
    # LayerNormSuper(96).set_sample_config(48); x: (batch=2, seq=7, hidden=48).
    nd3, sd3 = 96, 48
    idx3 = jnp.arange(nd3, dtype=jnp.float32)
    w3 = jnp.ones((nd3,), jnp.float32) + 0.01 * idx3
    b3 = jnp.zeros((nd3,), jnp.float32) + 0.001 * idx3
    x3 = jax.random.normal(k3, (2, 7, sd3), dtype=jnp.float32)
    out3 = jax.block_until_ready(layer_norm_super(x3, w3, b3, sd3, eps=1e-5))
    ref3 = _reference(x3, w3, b3, sd3, 1e-5)
    assert out3.shape == x3.shape
    assert jnp.allclose(out3, ref3, atol=2e-5, rtol=2e-5)

    print("KERNEL_OK")
</pallas_src>

<mosaic_0001>
module attributes {stable_mosaic.version = 11 : i64} {
  func.func @_layernorm_packed_kernel(%arg0: i32, %arg1: memref<8x128xf32, #tpu.memory_space<vmem>>, %arg2: memref<1x128xf32, #tpu.memory_space<vmem>>, %arg3: memref<1x128xf32, #tpu.memory_space<vmem>>, %arg4: memref<128x8xf32, #tpu.memory_space<vmem>>, %arg5: memref<8x128xf32, #tpu.memory_space<vmem>>, %arg6: memref<8x128xf32, #tpu.memory_space<vmem>>) attributes {dimension_semantics = [#tpu.dimension_semantics<parallel>], iteration_bounds = array<i64: 1>, scalar_prefetch = 0 : i64, scratch_operands = 0 : i64, tpu.core_type = #tpu.core_type<tc>, window_params = [{transform_indices = @transform_0, window_bounds = array<i64: 8, 128>}, {pipeline_mode = #tpu.pipeline_mode<synchronous>, transform_indices = @transform_1, window_bounds = array<i64: 1, 128>}, {pipeline_mode = #tpu.pipeline_mode<synchronous>, transform_indices = @transform_2, window_bounds = array<i64: 1, 128>}, {pipeline_mode = #tpu.pipeline_mode<synchronous>, transform_indices = @transform_3, window_bounds = array<i64: 128, 8>}, {pipeline_mode = #tpu.pipeline_mode<synchronous>, transform_indices = @transform_4, window_bounds = array<i64: 8, 128>}, {transform_indices = @transform_5, window_bounds = array<i64: 8, 128>}]} {
    %c0 = arith.constant 0 : index
    %c0_0 = arith.constant 0 : index
    %0 = vector.load %arg1[%c0, %c0_0] : memref<8x128xf32, #tpu.memory_space<vmem>>, vector<8x128xf32>
    %c0_1 = arith.constant 0 : index
    %c0_2 = arith.constant 0 : index
    %1 = vector.load %arg2[%c0_1, %c0_2] : memref<1x128xf32, #tpu.memory_space<vmem>>, vector<1x128xf32>
    %c0_3 = arith.constant 0 : index
    %c0_4 = arith.constant 0 : index
    %2 = vector.load %arg3[%c0_3, %c0_4] : memref<1x128xf32, #tpu.memory_space<vmem>>, vector<1x128xf32>
    %c0_5 = arith.constant 0 : index
    %c0_6 = arith.constant 0 : index
    %3 = vector.load %arg4[%c0_5, %c0_6] : memref<128x8xf32, #tpu.memory_space<vmem>>, vector<128x8xf32>
    %c0_7 = arith.constant 0 : index
    %c0_8 = arith.constant 0 : index
    %4 = vector.load %arg5[%c0_7, %c0_8] : memref<8x128xf32, #tpu.memory_space<vmem>>, vector<8x128xf32>
    %cst = arith.constant dense<0.000000e+00> : vector<8x8xf32>
    %5 = tpu.matmul %0, %3, %cst {dimension_numbers = #tpu.dot_dimension_numbers<[1], [0], [0], [1], [0, 0, 1, 1], [], []>, precision = #tpu.contract_precision<fp32>} : vector<8x128xf32>, vector<128x8xf32>, vector<8x8xf32> -> vector<8x8xf32>
    %cst_9 = arith.constant dense<0.000000e+00> : vector<8x128xf32>
    %6 = tpu.matmul %5, %4, %cst_9 {dimension_numbers = #tpu.dot_dimension_numbers<[1], [0], [0], [1], [0, 0, 1, 1], [], []>, precision = #tpu.contract_precision<fp32>} : vector<8x8xf32>, vector<8x128xf32>, vector<8x128xf32> -> vector<8x128xf32>
    %7 = arith.subf %0, %6 : vector<8x128xf32>
    %8 = arith.mulf %7, %7 : vector<8x128xf32>
    %cst_10 = arith.constant dense<0.000000e+00> : vector<8x8xf32>
    %9 = tpu.matmul %8, %3, %cst_10 {dimension_numbers = #tpu.dot_dimension_numbers<[1], [0], [0], [1], [0, 0, 1, 1], [], []>, precision = #tpu.contract_precision<fp32>} : vector<8x128xf32>, vector<128x8xf32>, vector<8x8xf32> -> vector<8x8xf32>
    %cst_11 = arith.constant dense<0.000000e+00> : vector<8x128xf32>
    %10 = tpu.matmul %9, %4, %cst_11 {dimension_numbers = #tpu.dot_dimension_numbers<[1], [0], [0], [1], [0, 0, 1, 1], [], []>, precision = #tpu.contract_precision<fp32>} : vector<8x8xf32>, vector<8x128xf32>, vector<8x128xf32> -> vector<8x128xf32>
    %cst_12 = arith.constant 9.99999974E-6 : f32
    %11 = vector.broadcast %cst_12 : f32 to vector<8x128xf32>
    %12 = arith.addf %10, %11 : vector<8x128xf32>
    %13 = math.rsqrt %12 : vector<8x128xf32>
    %14 = arith.mulf %7, %13 : vector<8x128xf32>
    %15 = vector.broadcast %1 : vector<1x128xf32> to vector<8x128xf32>
    %16 = arith.mulf %14, %15 : vector<8x128xf32>
    %17 = vector.broadcast %2 : vector<1x128xf32> to vector<8x128xf32>
    %18 = arith.addf %16, %17 : vector<8x128xf32>
    %c0_13 = arith.constant 0 : index
    %c0_14 = arith.constant 0 : index
    %19 = vector.load %arg6[%c0_13, %c0_14] : memref<8x128xf32, #tpu.memory_space<vmem>>, vector<8x128xf32>
    tpu.vector_store %arg6[%c0_13, %c0_14], %18 {strides = array<i32>} : memref<8x128xf32, #tpu.memory_space<vmem>>, vector<8x128xf32>,
    return
  }
  func.func @transform_0(%arg0: i32) -> (i32, i32) {
    %c0_i32 = arith.constant 0 : i32
    %c0_i32_0 = arith.constant 0 : i32
    return %arg0, %c0_i32 : i32, i32
  }
  func.func @transform_1(%arg0: i32) -> (i32, i32) {
    %c0_i32 = arith.constant 0 : i32
    %c0_i32_0 = arith.constant 0 : i32
    %c0_i32_1 = arith.constant 0 : i32
    return %c0_i32, %c0_i32_0 : i32, i32
  }
  func.func @transform_2(%arg0: i32) -> (i32, i32) {
    %c0_i32 = arith.constant 0 : i32
    %c0_i32_0 = arith.constant 0 : i32
    %c0_i32_1 = arith.constant 0 : i32
    return %c0_i32, %c0_i32_0 : i32, i32
  }
  func.func @transform_3(%arg0: i32) -> (i32, i32) {
    %c0_i32 = arith.constant 0 : i32
    %c0_i32_0 = arith.constant 0 : i32
    %c0_i32_1 = arith.constant 0 : i32
    return %c0_i32, %c0_i32_0 : i32, i32
  }
  func.func @transform_4(%arg0: i32) -> (i32, i32) {
    %c0_i32 = arith.constant 0 : i32
    %c0_i32_0 = arith.constant 0 : i32
    %c0_i32_1 = arith.constant 0 : i32
    return %c0_i32, %c0_i32_0 : i32, i32
  }
  func.func @transform_5(%arg0: i32) -> (i32, i32) {
    %c0_i32 = arith.constant 0 : i32
    %c0_i32_0 = arith.constant 0 : i32
    return %arg0, %c0_i32 : i32, i32
  }
}

</mosaic_0001>

<llo_original>
// kernel: tpu_custom_call.1
$region0: #{tpu_custom_call.1}
  #allocation0 [shape = 'u32[]', space=smem, size = 0x4, offset = 0x4, fixed_abs, tag = 'smem constant byte address 0x4 - core index']
  #allocation1 [shape = 'u32[144,128]{1,0:T(1,128)}', space=vmem, size = 0x12000, scoped, tag = 'internal scratch']
  %s0 = inlined_call_operand.vmem [shape: f32[8,128], index: 0, kind: input, shape index: {}]
  %s1 = inlined_call_operand.vmem [shape: f32[1,128], index: 1, kind: input, shape index: {}]
  %s2 = inlined_call_operand.vmem [shape: f32[1,128], index: 2, kind: input, shape index: {}]
  %s3 = inlined_call_operand.vmem [shape: f32[128,8], index: 3, kind: input, shape index: {}]
  %s4 = inlined_call_operand.vmem [shape: f32[8,128], index: 4, kind: input, shape index: {}]
  %s5 = inlined_call_operand.hbm [shape: f32[8,128], index: 5, kind: output, shape index: {}]
  %s6 = sld [smem:[#allocation0]]
  $region30: #{tpu_custom_call.1} parent=0
    _
  %s8 = ssub.s32 1, %s6
  %s9 = scalar_select 0, %s8, %s6
  $region1: #{tpu_custom_call.1} parent=0
    #allocation2 [shape = 'u8[4096]{0}', space=vmem, size = 0x1000, scoped, tag = 'output window, operand 0, single buffered']
    #allocation3 [shape = 's32[1]{0}', space=sflag, size = 0x4, scoped, tag = 'scoped memory for tpu_custom_call.1']
    %10 = vsyncpa [#allocation3], 0
    // Predicated region
    $region2: #{tpu_custom_call.1} parent=1 // pred_check
      _
    $region3: #{tpu_custom_call.1} parent=1 // pred_check_branch
      %12 = sbr.rel (0) target = $region5
    $region4: #{tpu_custom_call.1} parent=1 // pred_region
      _
    $region5: #{tpu_custom_call.1} parent=1 // pred_fallthru
      _
    // Predicated region
    $region6: #{tpu_custom_call.1} parent=1 // pred_check
      _
    $region7: #{tpu_custom_call.1} parent=1 // pred_check_branch
      %14 = sbr.rel (0) target = $region9
    $region8: #{tpu_custom_call.1} parent=1 // pred_region
      _
    $region9: #{tpu_custom_call.1} parent=1 // pred_fallthru
      _
    // Predicated region
    $region10: #{tpu_custom_call.1} parent=1 // pred_check
      _
    $region11: #{tpu_custom_call.1} parent=1 // pred_check_branch
      %16 = sbr.rel (0) target = $region13
    $region12: #{tpu_custom_call.1} parent=1 // pred_region
      _
    $region13: #{tpu_custom_call.1} parent=1 // pred_fallthru
      _
    // Predicated region
    $region14: #{tpu_custom_call.1} parent=1 // pred_check
      _
    $region15: #{tpu_custom_call.1} parent=1 // pred_check_branch
      %18 = sbr.rel (0) target = $region17
    $region16: #{tpu_custom_call.1} parent=1 // pred_region
      _
    $region17: #{tpu_custom_call.1} parent=1 // pred_fallthru
      _
    // Predicated region
    $region18: #{tpu_custom_call.1} parent=1 // pred_check
      _
    $region19: #{tpu_custom_call.1} parent=1 // pred_check_branch
      %20 = sbr.rel (0) target = $region21
    $region20: #{tpu_custom_call.1} parent=1 // pred_region
      _
    $region21: #{tpu_custom_call.1} parent=1 // pred_fallthru
      _
    %v21 = vld [vmem:[%s0] sm:$0xff]
    %v22 = vld [vmem:[%s1] sm:$0x1]
    %v23 = vld [vmem:[%s2] sm:$0x1]
    %v24 = vld [vmem:[%s3] sm:$0xff]
    %v25 = vld [vmem:[%s3 + $0x8] sm:$0xff]
    %v26 = vld [vmem:[%s3 + $0x10] sm:$0xff]
    %v27 = vld [vmem:[%s3 + $0x18] sm:$0xff]
    %v28 = vld [vmem:[%s3 + $0x20] sm:$0xff]
    %v29 = vld [vmem:[%s3 + $0x28] sm:$0xff]
    %v30 = vld [vmem:[%s3 + $0x30] sm:$0xff]
    %v31 = vld [vmem:[%s3 + $0x38] sm:$0xff]
    %v32 = vld [vmem:[%s3 + $0x40] sm:$0xff]
    %v33 = vld [vmem:[%s3 + $0x48] sm:$0xff]
    %v34 = vld [vmem:[%s3 + $0x50] sm:$0xff]
    %v35 = vld [vmem:[%s3 + $0x58] sm:$0xff]
    %v36 = vld [vmem:[%s3 + $0x60] sm:$0xff]
    %v37 = vld [vmem:[%s3 + $0x68] sm:$0xff]
    %v38 = vld [vmem:[%s3 + $0x70] sm:$0xff]
    %v39 = vld [vmem:[%s3 + $0x78] sm:$0xff]
    %v40 = vld [vmem:[%s4] sm:$0xff]
    %41 = vmatprep.subr.mxu0 0.0
    %v42 = vand.u32 %v39, 4294901760
    %43 = vmatpush1.msra.mxu0 %v42
    %44 = vmatprep.subr.mxu0 0.0
    %v45 = vand.u32 %v38, 4294901760
    %46 = vmatpush1.msra.mxu0 %v45
    %47 = vmatprep.subr.mxu0 0.0
    %v48 = vand.u32 %v37, 4294901760
    %49 = vmatpush1.msra.mxu0 %v48
    %50 = vmatprep.subr.mxu0 0.0
    %v51 = vand.u32 %v36, 4294901760
    %52 = vmatpush1.msra.mxu0 %v51
    %53 = vmatprep.subr.mxu0 0.0
    %v54 = vand.u32 %v35, 4294901760
    %55 = vmatpush1.msra.mxu0 %v54
    %56 = vmatprep.subr.mxu0 0.0
    %v57 = vand.u32 %v34, 4294901760
    %58 = vmatpush1.msra.mxu0 %v57
    %59 = vmatprep.subr.mxu0 0.0
    %v60 = vand.u32 %v33, 4294901760
    %61 = vmatpush1.msra.mxu0 %v60
    %62 = vmatprep.subr.mxu0 0.0
    %v63 = vand.u32 %v32, 4294901760
    %64 = vmatpush1.msra.mxu0 %v63
    %65 = vmatprep.subr.mxu0 0.0
    %v66 = vand.u32 %v31, 4294901760
    %67 = vmatpush1.msra.mxu0 %v66
    %68 = vmatprep.subr.mxu0 0.0
    %v69 = vand.u32 %v30, 4294901760
    %70 = vmatpush1.msra.mxu0 %v69
    %71 = vmatprep.subr.mxu0 0.0
    %v72 = vand.u32 %v29, 4294901760
    %73 = vmatpush1.msra.mxu0 %v72
    %74 = vmatprep.subr.mxu0 0.0
    %v75 = vand.u32 %v28, 4294901760
    %76 = vmatpush1.msra.mxu0 %v75
    %77 = vmatprep.subr.mxu0 0.0
    %v78 = vand.u32 %v27, 4294901760
    %79 = vmatpush1.msra.mxu0 %v78
    %80 = vmatprep.subr.mxu0 0.0
    %v81 = vand.u32 %v26, 4294901760
    %82 = vmatpush1.msra.mxu0 %v81
    %83 = vmatprep.subr.mxu0 0.0
    %v84 = vand.u32 %v25, 4294901760
    %85 = vmatpush1.msra.mxu0 %v84
    %86 = vmatprep.subr.mxu0 0.0
    %v87 = vand.u32 %v24, 4294901760
    %88 = vmatpush1.msra.mxu0 %v87
    %89 = vmatprep.subr.mxu0 0.0
    %90 = vmatpush2.msra.mxu0 0.0
    %91 = vmatprep.subr.mxu0 0.0
    %92 = vmatpush2.msra.mxu0 0.0
    %93 = vmatprep.subr.mxu0 0.0
    %94 = vmatpush2.msra.mxu0 0.0
    %95 = vmatprep.subr.mxu0 0.0
    %96 = vmatpush2.msra.mxu0 0.0
    %97 = vmatprep.subr.mxu0 0.0
    %98 = vmatpush2.msra.mxu0 0.0
    %99 = vmatprep.subr.mxu0 0.0
    %100 = vmatpush2.msra.mxu0 0.0
    %101 = vmatprep.subr.mxu0 0.0
    %102 = vmatpush2.msra.mxu0 0.0
    %103 = vmatprep.subr.mxu0 0.0
    %104 = vmatpush2.msra.mxu0 0.0
    %105 = vmatprep.subr.mxu0 0.0
    %106 = vmatpush2.msra.mxu0 0.0
    %107 = vmatprep.subr.mxu0 0.0
    %108 = vmatpush2.msra.mxu0 0.0
    %109 = vmatprep.subr.mxu0 0.0
    %110 = vmatpush2.msra.mxu0 0.0
    %111 = vmatprep.subr.mxu0 0.0
    %112 = vmatpush2.msra.mxu0 0.0
    %113 = vmatprep.subr.mxu0 0.0
    %114 = vmatpush2.msra.mxu0 0.0
    %115 = vmatprep.subr.mxu0 0.0
    %116 = vmatpush2.msra.mxu0 0.0
    %117 = vmatprep.subr.mxu0 0.0
    %118 = vmatpush2.msra.mxu0 0.0
    %119 = vmatprep.subr.mxu0 0.0
    %120 = vmatpush2.msra.mxu0 0.0
    %121 = vmatprep.mubr.f32.mxu0 0.0
    %v122 = vand.u32 %v21, 4294901760
    %v123 = vsub.f32 %v21, %v122
    %v124 = vand.u32 %v123, 4294901760
    %v125 = vsub.f32 %v123, %v124
    %v126 = vand.u32 %v125, 4294901760
    %127 = vmatmul.mubr.f32.gmra.mxu0 %v126
    %v128 = vpop.f32.mrf.mxu0
    %v129 = vadd.f32 0.0, %v128
    %v130 = vpop.f32.mrf.mxu0
    %131 = vdwg.mxu0
    %132 = vmatprep.subr.mxu0 0.0
    %v133 = vand.u32 %v39, 4294901760
    %v134 = vsub.f32 %v39, %v133
    %v135 = vand.u32 %v134, 4294901760
    %v136 = vsub.f32 %v134, %v135
    %v137 = vand.u32 %v136, 4294901760
    %138 = vmatpush1.msra.mxu0 %v137
    %139 = vmatprep.subr.mxu0 0.0
    %v140 = vand.u32 %v38, 4294901760
    %v141 = vsub.f32 %v38, %v140
    %v142 = vand.u32 %v141, 4294901760
    %v143 = vsub.f32 %v141, %v142
    %v144 = vand.u32 %v143, 4294901760
    %145 = vmatpush1.msra.mxu0 %v144
    %146 = vmatprep.subr.mxu0 0.0
    %v147 = vand.u32 %v37, 4294901760
    %v148 = vsub.f32 %v37, %v147
    %v149 = vand.u32 %v148, 4294901760
    %v150 = vsub.f32 %v148, %v149
    %v151 = vand.u32 %v150, 4294901760
    %152 = vmatpush1.msra.mxu0 %v151
    %153 = vmatprep.subr.mxu0 0.0
    %v154 = vand.u32 %v36, 4294901760
    %v155 = vsub.f32 %v36, %v154
    %v156 = vand.u32 %v155, 4294901760
    %v157 = vsub.f32 %v155, %v156
    %v158 = vand.u32 %v157, 4294901760
    %159 = vmatpush1.msra.mxu0 %v158
    %160 = vmatprep.subr.mxu0 0.0
    %v161 = vand.u32 %v35, 4294901760
    %v162 = vsub.f32 %v35, %v161
    %v163 = vand.u32 %v162, 4294901760
    %v164 = vsub.f32 %v162, %v163
    %v165 = vand.u32 %v164, 4294901760
    %166 = vmatpush1.msra.mxu0 %v165
    %167 = vmatprep.subr.mxu0 0.0
    %v168 = vand.u32 %v34, 4294901760
    %v169 = vsub.f32 %v34, %v168
    %v170 = vand.u32 %v169, 4294901760
    %v171 = vsub.f32 %v169, %v170
    %v172 = vand.u32 %v171, 4294901760
    %173 = vmatpush1.msra.mxu0 %v172
    %174 = vmatprep.subr.mxu0 0.0
    %v175 = vand.u32 %v33, 4294901760
    %v176 = vsub.f32 %v33, %v175
    %v177 = vand.u32 %v176, 4294901760
    %v178 = vsub.f32 %v176, %v177
    %v179 = vand.u32 %v178, 4294901760
    %180 = vmatpush1.msra.mxu0 %v179
    %181 = vmatprep.subr.mxu0 0.0
    %v182 = vand.u32 %v32, 4294901760
    %v183 = vsub.f32 %v32, %v182
    %v184 = vand.u32 %v183, 4294901760
    %v185 = vsub.f32 %v183, %v184
    %v186 = vand.u32 %v185, 4294901760
    %187 = vmatpush1.msra.mxu0 %v186
    %188 = vmatprep.subr.mxu0 0.0
    %v189 = vand.u32 %v31, 4294901760
    %v190 = vsub.f32 %v31, %v189
    %v191 = vand.u32 %v190, 4294901760
    %v192 = vsub.f32 %v190, %v191
    %v193 = vand.u32 %v192, 4294901760
    %194 = vmatpush1.msra.mxu0 %v193
    %195 = vmatprep.subr.mxu0 0.0
    %v196 = vand.u32 %v30, 4294901760
    %v197 = vsub.f32 %v30, %v196
    %v198 = vand.u32 %v197, 4294901760
    %v199 = vsub.f32 %v197, %v198
    %v200 = vand.u32 %v199, 4294901760
    %201 = vmatpush1.msra.mxu0 %v200
    %202 = vmatprep.subr.mxu0 0.0
    %v203 = vand.u32 %v29, 4294901760
    %v204 = vsub.f32 %v29, %v203
    %v205 = vand.u32 %v204, 4294901760
    %v206 = vsub.f32 %v204, %v205
    %v207 = vand.u32 %v206, 4294901760
    %208 = vmatpush1.msra.mxu0 %v207
    %209 = vmatprep.subr.mxu0 0.0
    %v210 = vand.u32 %v28, 4294901760
    %v211 = vsub.f32 %v28, %v210
    %v212 = vand.u32 %v211, 4294901760
    %v213 = vsub.f32 %v211, %v212
    %v214 = vand.u32 %v213, 4294901760
    %215 = vmatpush1.msra.mxu0 %v214
    %216 = vmatprep.subr.mxu0 0.0
    %v217 = vand.u32 %v27, 4294901760
    %v218 = vsub.f32 %v27, %v217
    %v219 = vand.u32 %v218, 4294901760
    %v220 = vsub.f32 %v218, %v219
    %v221 = vand.u32 %v220, 4294901760
    %222 = vmatpush1.msra.mxu0 %v221
    %223 = vmatprep.subr.mxu0 0.0
    %v224 = vand.u32 %v26, 4294901760
    %v225 = vsub.f32 %v26, %v224
    %v226 = vand.u32 %v225, 4294901760
    %v227 = vsub.f32 %v225, %v226
    %v228 = vand.u32 %v227, 4294901760
    %229 = vmatpush1.msra.mxu0 %v228
    %230 = vmatprep.subr.mxu0 0.0
    %v231 = vand.u32 %v25, 4294901760
    %v232 = vsub.f32 %v25, %v231
    %v233 = vand.u32 %v232, 4294901760
    %v234 = vsub.f32 %v232, %v233
    %v235 = vand.u32 %v234, 4294901760
    %236 = vmatpush1.msra.mxu0 %v235
    %237 = vmatprep.subr.mxu0 0.0
    %v238 = vand.u32 %v24, 4294901760
    %v239 = vsub.f32 %v24, %v238
    %v240 = vand.u32 %v239, 4294901760
    %v241 = vsub.f32 %v239, %v240
    %v242 = vand.u32 %v241, 4294901760
    %243 = vmatpush1.msra.mxu0 %v242
    %244 = vmatprep.subr.mxu0 0.0
    %245 = vmatpush2.msra.mxu0 0.0
    %246 = vmatprep.subr.mxu0 0.0
    %247 = vmatpush2.msra.mxu0 0.0
    %248 = vmatprep.subr.mxu0 0.0
    %249 = vmatpush2.msra.mxu0 0.0
    %250 = vmatprep.subr.mxu0 0.0
    %251 = vmatpush2.msra.mxu0 0.0
    %252 = vmatprep.subr.mxu0 0.0
    %253 = vmatpush2.msra.mxu0 0.0
    %254 = vmatprep.subr.mxu0 0.0
    %255 = vmatpush2.msra.mxu0 0.0
    %256 = vmatprep.subr.mxu0 0.0
    %257 = vmatpush2.msra.mxu0 0.0
    %258 = vmatprep.subr.mxu0 0.0
    %259 = vmatpush2.msra.mxu0 0.0
    %260 = vmatprep.subr.mxu0 0.0
    %261 = vmatpush2.msra.mxu0 0.0
    %262 = vmatprep.subr.mxu0 0.0
    %263 = vmatpush2.msra.mxu0 0.0
    %264 = vmatprep.subr.mxu0 0.0
    %265 = vmatpush2.msra.mxu0 0.0
    %266 = vmatprep.subr.mxu0 0.0
    %267 = vmatpush2.msra.mxu0 0.0
    %268 = vmatprep.subr.mxu0 0.0
    %269 = vmatpush2.msra.mxu0 0.0
    %270 = vmatprep.subr.mxu0 0.0
    %271 = vmatpush2.msra.mxu0 0.0
    %272 = vmatprep.subr.mxu0 0.0
    %273 = vmatpush2.msra.mxu0 0.0
    %274 = vmatprep.subr.mxu0 0.0
    %275 = vmatpush2.msra.mxu0 0.0
    %276 = vmatprep.mubr.f32.mxu0 0.0
    %v277 = vand.u32 %v21, 4294901760
    %278 = vmatmul.mubr.f32.gmra.mxu0 %v277
    %v279 = vpop.f32.mrf.mxu0
    %v280 = vadd.f32 %v129, %v279
    %v281 = vpop.f32.mrf.mxu0
    %282 = vdwg.mxu0
    %283 = vmatprep.subr.mxu0 0.0
    %v284 = vand.u32 %v39, 4294901760
    %v285 = vsub.f32 %v39, %v284
    %286 = vmatpush1.msra.mxu0 %v285
    %287 = vmatprep.subr.mxu0 0.0
    %v288 = vand.u32 %v38, 4294901760
    %v289 = vsub.f32 %v38, %v288
    %290 = vmatpush1.msra.mxu0 %v289
    %291 = vmatprep.subr.mxu0 0.0
    %v292 = vand.u32 %v37, 4294901760
    %v293 = vsub.f32 %v37, %v292
    %294 = vmatpush1.msra.mxu0 %v293
    %295 = vmatprep.subr.mxu0 0.0
    %v296 = vand.u32 %v36, 4294901760
    %v297 = vsub.f32 %v36, %v296
    %298 = vmatpush1.msra.mxu0 %v297
    %299 = vmatprep.subr.mxu0 0.0
    %v300 = vand.u32 %v35, 4294901760
    %v301 = vsub.f32 %v35, %v300
    %302 = vmatpush1.msra.mxu0 %v301
    %303 = vmatprep.subr.mxu0 0.0
    %v304 = vand.u32 %v34, 4294901760
    %v305 = vsub.f32 %v34, %v304
    %306 = vmatpush1.msra.mxu0 %v305
    %307 = vmatprep.subr.mxu0 0.0
    %v308 = vand.u32 %v33, 4294901760
    %v309 = vsub.f32 %v33, %v308
    %310 = vmatpush1.msra.mxu0 %v309
    %311 = vmatprep.subr.mxu0 0.0
    %v312 = vand.u32 %v32, 4294901760
    %v313 = vsub.f32 %v32, %v312
    %314 = vmatpush1.msra.mxu0 %v313
    %315 = vmatprep.subr.mxu0 0.0
    %v316 = vand.u32 %v31, 4294901760
    %v317 = vsub.f32 %v31, %v316
    %318 = vmatpush1.msra.mxu0 %v317
    %319 = vmatprep.subr.mxu0 0.0
    %v320 = vand.u32 %v30, 4294901760
    %v321 = vsub.f32 %v30, %v320
    %322 = vmatpush1.msra.mxu0 %v321
    %323 = vmatprep.subr.mxu0 0.0
    %v324 = vand.u32 %v29, 4294901760
    %v325 = vsub.f32 %v29, %v324
    %326 = vmatpush1.msra.mxu0 %v325
    %327 = vmatprep.subr.mxu0 0.0
    %v328 = vand.u32 %v28, 4294901760
    %v329 = vsub.f32 %v28, %v328
    %330 = vmatpush1.msra.mxu0 %v329
    %331 = vmatprep.subr.mxu0 0.0
    %v332 = vand.u32 %v27, 4294901760
    %v333 = vsub.f32 %v27, %v332
    %334 = vmatpush1.msra.mxu0 %v333
    %335 = vmatprep.subr.mxu0 0.0
    %v336 = vand.u32 %v26, 4294901760
    %v337 = vsub.f32 %v26, %v336
    %338 = vmatpush1.msra.mxu0 %v337
    %339 = vmatprep.subr.mxu0 0.0
    %v340 = vand.u32 %v25, 4294901760
    %v341 = vsub.f32 %v25, %v340
    %342 = vmatpush1.msra.mxu0 %v341
    %343 = vmatprep.subr.mxu0 0.0
    %v344 = vand.u32 %v24, 4294901760
    %v345 = vsub.f32 %v24, %v344
    %346 = vmatpush1.msra.mxu0 %v345
    %347 = vmatprep.subr.mxu0 0.0
    %348 = vmatpush2.msra.mxu0 0.0
    %349 = vmatprep.subr.mxu0 0.0
    %350 = vmatpush2.msra.mxu0 0.0
    %351 = vmatprep.subr.mxu0 0.0
    %352 = vmatpush2.msra.mxu0 0.0
    %353 = vmatprep.subr.mxu0 0.0
    %354 = vmatpush2.msra.mxu0 0.0
    %355 = vmatprep.subr.mxu0 0.0
    %356 = vmatpush2.msra.mxu0 0.0
    %357 = vmatprep.subr.mxu0 0.0
    %358 = vmatpush2.msra.mxu0 0.0
    %359 = vmatprep.subr.mxu0 0.0
    %360 = vmatpush2.msra.mxu0 0.0
    %361 = vmatprep.subr.mxu0 0.0
    %362 = vmatpush2.msra.mxu0 0.0
    %363 = vmatprep.subr.mxu0 0.0
    %364 = vmatpush2.msra.mxu0 0.0
    %365 = vmatprep.subr.mxu0 0.0
    %366 = vmatpush2.msra.mxu0 0.0
    %367 = vmatprep.subr.mxu0 0.0
    %368 = vmatpush2.msra.mxu0 0.0
    %369 = vmatprep.subr.mxu0 0.0
    %370 = vmatpush2.msra.mxu0 0.0
    %371 = vmatprep.subr.mxu0 0.0
    %372 = vmatpush2.msra.mxu0 0.0
    %373 = vmatprep.subr.mxu0 0.0
    %374 = vmatpush2.msra.mxu0 0.0
    %375 = vmatprep.subr.mxu0 0.0
    %376 = vmatpush2.msra.mxu0 0.0
    %377 = vmatprep.subr.mxu0 0.0
    %378 = vmatpush2.msra.mxu0 0.0
    %379 = vmatprep.mubr.f32.mxu0 0.0
    %v380 = vand.u32 %v21, 4294901760
    %v381 = vsub.f32 %v21, %v380
    %382 = vmatmul.mubr.f32.gmra.mxu0 %v381
    %v383 = vpop.f32.mrf.mxu0
    %v384 = vadd.f32 %v280, %v383
    %v385 = vpop.f32.mrf.mxu0
    %386 = vdwg.mxu0
    %387 = vmatprep.subr.mxu0 0.0
    %v388 = vand.u32 %v39, 4294901760
    %389 = vmatpush1.msra.mxu0 %v388
    %390 = vmatprep.subr.mxu0 0.0
    %v391 = vand.u32 %v38, 4294901760
    %392 = vmatpush1.msra.mxu0 %v391
    %393 = vmatprep.subr.mxu0 0.0
    %v394 = vand.u32 %v37, 4294901760
    %395 = vmatpush1.msra.mxu0 %v394
    %396 = vmatprep.subr.mxu0 0.0
    %v397 = vand.u32 %v36, 4294901760
    %398 = vmatpush1.msra.mxu0 %v397
    %399 = vmatprep.subr.mxu0 0.0
    %v400 = vand.u32 %v35, 4294901760
    %401 = vmatpush1.msra.mxu0 %v400
    %402 = vmatprep.subr.mxu0 0.0
    %v403 = vand.u32 %v34, 4294901760
    %404 = vmatpush1.msra.mxu0 %v403
    %405 = vmatprep.subr.mxu0 0.0
    %v406 = vand.u32 %v33, 4294901760
    %407 = vmatpush1.msra.mxu0 %v406
    %408 = vmatprep.subr.mxu0 0.0
    %v409 = vand.u32 %v32, 4294901760
    %410 = vmatpush1.msra.mxu0 %v409
    %411 = vmatprep.subr.mxu0 0.0
    %v412 = vand.u32 %v31, 4294901760
    %413 = vmatpush1.msra.mxu0 %v412
    %414 = vmatprep.subr.mxu0 0.0
    %v415 = vand.u32 %v30, 4294901760
    %416 = vmatpush1.msra.mxu0 %v415
    %417 = vmatprep.subr.mxu0 0.0
    %v418 = vand.u32 %v29, 4294901760
    %419 = vmatpush1.msra.mxu0 %v418
    %420 = vmatprep.subr.mxu0 0.0
    %v421 = vand.u32 %v28, 4294901760
    %422 = vmatpush1.msra.mxu0 %v421
    %423 = vmatprep.subr.mxu0 0.0
    %v424 = vand.u32 %v27, 4294901760
    %425 = vmatpush1.msra.mxu0 %v424
    %426 = vmatprep.subr.mxu0 0.0
    %v427 = vand.u32 %v26, 4294901760
    %428 = vmatpush1.msra.mxu0 %v427
    %429 = vmatprep.subr.mxu0 0.0
    %v430 = vand.u32 %v25, 4294901760
    %431 = vmatpush1.msra.mxu0 %v430
    %432 = vmatprep.subr.mxu0 0.0
    %v433 = vand.u32 %v24, 4294901760
    %434 = vmatpush1.msra.mxu0 %v433
    %435 = vmatprep.subr.mxu0 0.0
    %436 = vmatpush2.msra.mxu0 0.0
    %437 = vmatprep.subr.mxu0 0.0
    %438 = vmatpush2.msra.mxu0 0.0
    %439 = vmatprep.subr.mxu0 0.0
    %440 = vmatpush2.msra.mxu0 0.0
    %441 = vmatprep.subr.mxu0 0.0
    %442 = vmatpush2.msra.mxu0 0.0
    %443 = vmatprep.subr.mxu0 0.0
    %444 = vmatpush2.msra.mxu0 0.0
    %445 = vmatprep.subr.mxu0 0.0
    %446 = vmatpush2.msra.mxu0 0.0
    %447 = vmatprep.subr.mxu0 0.0
    %448 = vmatpush2.msra.mxu0 0.0
    %449 = vmatprep.subr.mxu0 0.0
    %450 = vmatpush2.msra.mxu0 0.0
    %451 = vmatprep.subr.mxu0 0.0
    %452 = vmatpush2.msra.mxu0 0.0
    %453 = vmatprep.subr.mxu0 0.0
    %454 = vmatpush2.msra.mxu0 0.0
    %455 = vmatprep.subr.mxu0 0.0
    %456 = vmatpush2.msra.mxu0 0.0
    %457 = vmatprep.subr.mxu0 0.0
    %458 = vmatpush2.msra.mxu0 0.0
    %459 = vmatprep.subr.mxu0 0.0
    %460 = vmatpush2.msra.mxu0 0.0
    %461 = vmatprep.subr.mxu0 0.0
    %462 = vmatpush2.msra.mxu0 0.0
    %463 = vmatprep.subr.mxu0 0.0
    %464 = vmatpush2.msra.mxu0 0.0
    %465 = vmatprep.subr.mxu0 0.0
    %466 = vmatpush2.msra.mxu0 0.0
    %467 = vmatprep.mubr.f32.mxu0 0.0
    %v468 = vand.u32 %v21, 4294901760
    %v469 = vsub.f32 %v21, %v468
    %v470 = vand.u32 %v469, 4294901760
    %471 = vmatmul.mubr.f32.gmra.mxu0 %v470
    %v472 = vpop.f32.mrf.mxu0
    %v473 = vadd.f32 %v384, %v472
    %v474 = vpop.f32.mrf.mxu0
    %475 = vdwg.mxu0
    %476 = vmatprep.subr.mxu0 0.0
    %v477 = vand.u32 %v39, 4294901760
    %v478 = vsub.f32 %v39, %v477
    %v479 = vand.u32 %v478, 4294901760
    %480 = vmatpush1.msra.mxu0 %v479
    %481 = vmatprep.subr.mxu0 0.0
    %v482 = vand.u32 %v38, 4294901760
    %v483 = vsub.f32 %v38, %v482
    %v484 = vand.u32 %v483, 4294901760
    %485 = vmatpush1.msra.mxu0 %v484
    %486 = vmatprep.subr.mxu0 0.0
    %v487 = vand.u32 %v37, 4294901760
    %v488 = vsub.f32 %v37, %v487
    %v489 = vand.u32 %v488, 4294901760
    %490 = vmatpush1.msra.mxu0 %v489
    %491 = vmatprep.subr.mxu0 0.0
    %v492 = vand.u32 %v36, 4294901760
    %v493 = vsub.f32 %v36, %v492
    %v494 = vand.u32 %v493, 4294901760
    %495 = vmatpush1.msra.mxu0 %v494
    %496 = vmatprep.subr.mxu0 0.0
    %v497 = vand.u32 %v35, 4294901760
    %v498 = vsub.f32 %v35, %v497
    %v499 = vand.u32 %v498, 4294901760
    %500 = vmatpush1.msra.mxu0 %v499
    %501 = vmatprep.subr.mxu0 0.0
    %v502 = vand.u32 %v34, 4294901760
    %v503 = vsub.f32 %v34, %v502
    %v504 = vand.u32 %v503, 4294901760
    %505 = vmatpush1.msra.mxu0 %v504
    %506 = vmatprep.subr.mxu0 0.0
    %v507 = vand.u32 %v33, 4294901760
    %v508 = vsub.f32 %v33, %v507
    %v509 = vand.u32 %v508, 4294901760
    %510 = vmatpush1.msra.mxu0 %v509
    %511 = vmatprep.subr.mxu0 0.0
    %v512 = vand.u32 %v32, 4294901760
    %v513 = vsub.f32 %v32, %v512
    %v514 = vand.u32 %v513, 4294901760
    %515 = vmatpush1.msra.mxu0 %v514
    %516 = vmatprep.subr.mxu0 0.0
    %v517 = vand.u32 %v31, 4294901760
    %v518 = vsub.f32 %v31, %v517
    %v519 = vand.u32 %v518, 4294901760
    %520 = vmatpush1.msra.mxu0 %v519
    %521 = vmatprep.subr.mxu0 0.0
    %v522 = vand.u32 %v30, 4294901760
    %v523 = vsub.f32 %v30, %v522
    %v524 = vand.u32 %v523, 4294901760
    %525 = vmatpush1.msra.mxu0 %v524
    %526 = vmatprep.subr.mxu0 0.0
    %v527 = vand.u32 %v29, 4294901760
    %v528 = vsub.f32 %v29, %v527
    %v529 = vand.u32 %v528, 4294901760
    %530 = vmatpush1.msra.mxu0 %v529
    %531 = vmatprep.subr.mxu0 0.0
    %v532 = vand.u32 %v28, 4294901760
    %v533 = vsub.f32 %v28, %v532
    %v534 = vand.u32 %v533, 4294901760
    %535 = vmatpush1.msra.mxu0 %v534
    %536 = vmatprep.subr.mxu0 0.0
    %v537 = vand.u32 %v27, 4294901760
    %v538 = vsub.f32 %v27, %v537
    %v539 = vand.u32 %v538, 4294901760
    %540 = vmatpush1.msra.mxu0 %v539
    %541 = vmatprep.subr.mxu0 0.0
    %v542 = vand.u32 %v26, 4294901760
    %v543 = vsub.f32 %v26, %v542
    %v544 = vand.u32 %v543, 4294901760
    %545 = vmatpush1.msra.mxu0 %v544
    %546 = vmatprep.subr.mxu0 0.0
    %v547 = vand.u32 %v25, 4294901760
    %v548 = vsub.f32 %v25, %v547
    %v549 = vand.u32 %v548, 4294901760
    %550 = vmatpush1.msra.mxu0 %v549
    %551 = vmatprep.subr.mxu0 0.0
    %v552 = vand.u32 %v24, 4294901760
    %v553 = vsub.f32 %v24, %v552
    %v554 = vand.u32 %v553, 4294901760
    %555 = vmatpush1.msra.mxu0 %v554
    %556 = vmatprep.subr.mxu0 0.0
    %557 = vmatpush2.msra.mxu0 0.0
    %558 = vmatprep.subr.mxu0 0.0
    %559 = vmatpush2.msra.mxu0 0.0
    %560 = vmatprep.subr.mxu0 0.0
    %561 = vmatpush2.msra.mxu0 0.0
    %562 = vmatprep.subr.mxu0 0.0
    %563 = vmatpush2.msra.mxu0 0.0
    %564 = vmatprep.subr.mxu0 0.0
    %565 = vmatpush2.msra.mxu0 0.0
    %566 = vmatprep.subr.mxu0 0.0
    %567 = vmatpush2.msra.mxu0 0.0
    %568 = vmatprep.subr.mxu0 0.0
    %569 = vmatpush2.msra.mxu0 0.0
    %570 = vmatprep.subr.mxu0 0.0
    %571 = vmatpush2.msra.mxu0 0.0
    %572 = vmatprep.subr.mxu0 0.0
    %573 = vmatpush2.msra.mxu0 0.0
    %574 = vmatprep.subr.mxu0 0.0
    %575 = vmatpush2.msra.mxu0 0.0
    %576 = vmatprep.subr.mxu0 0.0
    %577 = vmatpush2.msra.mxu0 0.0
    %578 = vmatprep.subr.mxu0 0.0
    %579 = vmatpush2.msra.mxu0 0.0
    %580 = vmatprep.subr.mxu0 0.0
    %581 = vmatpush2.msra.mxu0 0.0
    %582 = vmatprep.subr.mxu0 0.0
    %583 = vmatpush2.msra.mxu0 0.0
    %584 = vmatprep.subr.mxu0 0.0
    %585 = vmatpush2.msra.mxu0 0.0
    %586 = vmatprep.subr.mxu0 0.0
    %587 = vmatpush2.msra.mxu0 0.0
    %588 = vmatprep.mubr.f32.mxu0 0.0
    %v589 = vand.u32 %v21, 4294901760
    %590 = vmatmul.mubr.f32.gmra.mxu0 %v589
    %v591 = vpop.f32.mrf.mxu0
    %v592 = vadd.f32 %v473, %v591
    %v593 = vpop.f32.mrf.mxu0
    %594 = vdwg.mxu0
    %595 = vmatprep.subr.mxu0 0.0
    %v596 = vand.u32 %v39, 4294901760
    %597 = vmatpush1.msra.mxu0 %v596
    %598 = vmatprep.subr.mxu0 0.0
    %v599 = vand.u32 %v38, 4294901760
    %600 = vmatpush1.msra.mxu0 %v599
    %601 = vmatprep.subr.mxu0 0.0
    %v602 = vand.u32 %v37, 4294901760
    %603 = vmatpush1.msra.mxu0 %v602
    %604 = vmatprep.subr.mxu0 0.0
    %v605 = vand.u32 %v36, 4294901760
    %606 = vmatpush1.msra.mxu0 %v605
    %607 = vmatprep.subr.mxu0 0.0
    %v608 = vand.u32 %v35, 4294901760
    %609 = vmatpush1.msra.mxu0 %v608
    %610 = vmatprep.subr.mxu0 0.0
    %v611 = vand.u32 %v34, 4294901760
    %612 = vmatpush1.msra.mxu0 %v611
    %613 = vmatprep.subr.mxu0 0.0
    %v614 = vand.u32 %v33, 4294901760
    %615 = vmatpush1.msra.mxu0 %v614
    %616 = vmatprep.subr.mxu0 0.0
    %v617 = vand.u32 %v32, 4294901760
    %618 = vmatpush1.msra.mxu0 %v617
    %619 = vmatprep.subr.mxu0 0.0
    %v620 = vand.u32 %v31, 4294901760
    %621 = vmatpush1.msra.mxu0 %v620
    %622 = vmatprep.subr.mxu0 0.0
    %v623 = vand.u32 %v30, 4294901760
    %624 = vmatpush1.msra.mxu0 %v623
    %625 = vmatprep.subr.mxu0 0.0
    %v626 = vand.u32 %v29, 4294901760
    %627 = vmatpush1.msra.mxu0 %v626
    %628 = vmatprep.subr.mxu0 0.0
    %v629 = vand.u32 %v28, 4294901760
    %630 = vmatpush1.msra.mxu0 %v629
    %631 = vmatprep.subr.mxu0 0.0
    %v632 = vand.u32 %v27, 4294901760
    %633 = vmatpush1.msra.mxu0 %v632
    %634 = vmatprep.subr.mxu0 0.0
    %v635 = vand.u32 %v26, 4294901760
    %636 = vmatpush1.msra.mxu0 %v635
    %637 = vmatprep.subr.mxu0 0.0
    %v638 = vand.u32 %v25, 4294901760
    %639 = vmatpush1.msra.mxu0 %v638
    %640 = vmatprep.subr.mxu0 0.0
    %v641 = vand.u32 %v24, 4294901760
    %642 = vmatpush1.msra.mxu0 %v641
    %643 = vmatprep.subr.mxu0 0.0
    %644 = vmatpush2.msra.mxu0 0.0
    %645 = vmatprep.subr.mxu0 0.0
    %646 = vmatpush2.msra.mxu0 0.0
    %647 = vmatprep.subr.mxu0 0.0
    %648 = vmatpush2.msra.mxu0 0.0
    %649 = vmatprep.subr.mxu0 0.0
    %650 = vmatpush2.msra.mxu0 0.0
    %651 = vmatprep.subr.mxu0 0.0
    %652 = vmatpush2.msra.mxu0 0.0
    %653 = vmatprep.subr.mxu0 0.0
    %654 = vmatpush2.msra.mxu0 0.0
    %655 = vmatprep.subr.mxu0 0.0
    %656 = vmatpush2.msra.mxu0 0.0
    %657 = vmatprep.subr.mxu0 0.0
    %658 = vmatpush2.msra.mxu0 0.0
    %659 = vmatprep.subr.mxu0 0.0
    %660 = vmatpush2.msra.mxu0 0.0
    %661 = vmatprep.subr.mxu0 0.0
    %662 = vmatpush2.msra.mxu0 0.0
    %663 = vmatprep.subr.mxu0 0.0
    %664 = vmatpush2.msra.mxu0 0.0
    %665 = vmatprep.subr.mxu0 0.0
    %666 = vmatpush2.msra.mxu0 0.0
    %667 = vmatprep.subr.mxu0 0.0
    %668 = vmatpush2.msra.mxu0 0.0
    %669 = vmatprep.subr.mxu0 0.0
    %670 = vmatpush2.msra.mxu0 0.0
    %671 = vmatprep.subr.mxu0 0.0
    %672 = vmatpush2.msra.mxu0 0.0
    %673 = vmatprep.subr.mxu0 0.0
    %674 = vmatpush2.msra.mxu0 0.0
    %675 = vmatprep.mubr.f32.mxu0 0.0
    %v676 = vand.u32 %v21, 4294901760
    %677 = vmatmul.mubr.f32.gmra.mxu0 %v676
    %v678 = vpop.f32.mrf.mxu0
    %v679 = vadd.f32 %v592, %v678
    %v680 = vpop.f32.mrf.mxu0
    %681 = vdwg.mxu0
    %vm682 = vcmask 64512
    %v684 = vsel %vm682, %v679, 0
    %686 = vmatprep.subr.mxu0 0.0
    %687 = vmatpush1.msra.mxu0 0.0
    %688 = vmatprep.subr.mxu0 0.0
    %689 = vmatpush1.msra.mxu0 0.0
    %690 = vmatprep.subr.mxu0 0.0
    %691 = vmatpush1.msra.mxu0 0.0
    %692 = vmatprep.subr.mxu0 0.0
    %693 = vmatpush1.msra.mxu0 0.0
    %694 = vmatprep.subr.mxu0 0.0
    %695 = vmatpush1.msra.mxu0 0.0
    %696 = vmatprep.subr.mxu0 0.0
    %697 = vmatpush1.msra.mxu0 0.0
    %698 = vmatprep.subr.mxu0 0.0
    %699 = vmatpush1.msra.mxu0 0.0
    %700 = vmatprep.subr.mxu0 0.0
    %701 = vmatpush1.msra.mxu0 0.0
    %702 = vmatprep.subr.mxu0 0.0
    %703 = vmatpush1.msra.mxu0 0.0
    %704 = vmatprep.subr.mxu0 0.0
    %705 = vmatpush1.msra.mxu0 0.0
    %706 = vmatprep.subr.mxu0 0.0
    %707 = vmatpush1.msra.mxu0 0.0
    %708 = vmatprep.subr.mxu0 0.0
    %709 = vmatpush1.msra.mxu0 0.0
    %710 = vmatprep.subr.mxu0 0.0
    %711 = vmatpush1.msra.mxu0 0.0
    %712 = vmatprep.subr.mxu0 0.0
    %713 = vmatpush1.msra.mxu0 0.0
    %714 = vmatprep.subr.mxu0 0.0
    %715 = vmatpush1.msra.mxu0 0.0
    %716 = vmatprep.subr.mxu0 0.0
    %v717 = vand.u32 %v40, 4294901760
    %718 = vmatpush1.msra.mxu0 %v717
    %719 = vmatprep.subr.mxu0 0.0
    %720 = vmatpush2.msra.mxu0 0.0
    %721 = vmatprep.subr.mxu0 0.0
    %722 = vmatpush2.msra.mxu0 0.0
    %723 = vmatprep.subr.mxu0 0.0
    %724 = vmatpush2.msra.mxu0 0.0
    %725 = vmatprep.subr.mxu0 0.0
    %726 = vmatpush2.msra.mxu0 0.0
    %727 = vmatprep.subr.mxu0 0.0
    %728 = vmatpush2.msra.mxu0 0.0
    %729 = vmatprep.subr.mxu0 0.0
    %730 = vmatpush2.msra.mxu0 0.0
    %731 = vmatprep.subr.mxu0 0.0
    %732 = vmatpush2.msra.mxu0 0.0
    %733 = vmatprep.subr.mxu0 0.0
    %734 = vmatpush2.msra.mxu0 0.0
    %735 = vmatprep.subr.mxu0 0.0
    %736 = vmatpush2.msra.mxu0 0.0
    %737 = vmatprep.subr.mxu0 0.0
    %738 = vmatpush2.msra.mxu0 0.0
    %739 = vmatprep.subr.mxu0 0.0
    %740 = vmatpush2.msra.mxu0 0.0
    %741 = vmatprep.subr.mxu0 0.0
    %742 = vmatpush2.msra.mxu0 0.0
    %743 = vmatprep.subr.mxu0 0.0
    %744 = vmatpush2.msra.mxu0 0.0
    %745 = vmatprep.subr.mxu0 0.0
    %746 = vmatpush2.msra.mxu0 0.0
    %747 = vmatprep.subr.mxu0 0.0
    %748 = vmatpush2.msra.mxu0 0.0
    %749 = vmatprep.subr.mxu0 0.0
    %750 = vmatpush2.msra.mxu0 0.0
    %751 = vmatprep.mubr.f32.mxu0 0.0
    %v752 = vand.u32 %v684, 4294901760
    %v753 = vsub.f32 %v684, %v752
    %v754 = vand.u32 %v753, 4294901760
    %v755 = vsub.f32 %v753, %v754
    %v756 = vand.u32 %v755, 4294901760
    %757 = vmatmul.mubr.f32.gmra.mxu0 %v756
    %v758 = vpop.f32.mrf.mxu0
    %v759 = vadd.f32 0.0, %v758
    %v760 = vpop.f32.mrf.mxu0
    %761 = vdwg.mxu0
    %762 = vmatprep.subr.mxu0 0.0
    %763 = vmatpush1.msra.mxu0 0.0
    %764 = vmatprep.subr.mxu0 0.0
    %765 = vmatpush1.msra.mxu0 0.0
    %766 = vmatprep.subr.mxu0 0.0
    %767 = vmatpush1.msra.mxu0 0.0
    %768 = vmatprep.subr.mxu0 0.0
    %769 = vmatpush1.msra.mxu0 0.0
    %770 = vmatprep.subr.mxu0 0.0
    %771 = vmatpush1.msra.mxu0 0.0
    %772 = vmatprep.subr.mxu0 0.0
    %773 = vmatpush1.msra.mxu0 0.0
    %774 = vmatprep.subr.mxu0 0.0
    %775 = vmatpush1.msra.mxu0 0.0
    %776 = vmatprep.subr.mxu0 0.0
    %777 = vmatpush1.msra.mxu0 0.0
    %778 = vmatprep.subr.mxu0 0.0
    %779 = vmatpush1.msra.mxu0 0.0
    %780 = vmatprep.subr.mxu0 0.0
    %781 = vmatpush1.msra.mxu0 0.0
    %782 = vmatprep.subr.mxu0 0.0
    %783 = vmatpush1.msra.mxu0 0.0
    %784 = vmatprep.subr.mxu0 0.0
    %785 = vmatpush1.msra.mxu0 0.0
    %786 = vmatprep.subr.mxu0 0.0
    %787 = vmatpush1.msra.mxu0 0.0
    %788 = vmatprep.subr.mxu0 0.0
    %789 = vmatpush1.msra.mxu0 0.0
    %790 = vmatprep.subr.mxu0 0.0
    %791 = vmatpush1.msra.mxu0 0.0
    %792 = vmatprep.subr.mxu0 0.0
    %v793 = vand.u32 %v40, 4294901760
    %v794 = vsub.f32 %v40, %v793
    %v795 = vand.u32 %v794, 4294901760
    %v796 = vsub.f32 %v794, %v795
    %v797 = vand.u32 %v796, 4294901760
    %798 = vmatpush1.msra.mxu0 %v797
    %799 = vmatprep.subr.mxu0 0.0
    %800 = vmatpush2.msra.mxu0 0.0
    %801 = vmatprep.subr.mxu0 0.0
    %802 = vmatpush2.msra.mxu0 0.0
    %803 = vmatprep.subr.mxu0 0.0
    %804 = vmatpush2.msra.mxu0 0.0
    %805 = vmatprep.subr.mxu0 0.0
    %806 = vmatpush2.msra.mxu0 0.0
    %807 = vmatprep.subr.mxu0 0.0
    %808 = vmatpush2.msra.mxu0 0.0
    %809 = vmatprep.subr.mxu0 0.0
    %810 = vmatpush2.msra.mxu0 0.0
    %811 = vmatprep.subr.mxu0 0.0
    %812 = vmatpush2.msra.mxu0 0.0
    %813 = vmatprep.subr.mxu0 0.0
    %814 = vmatpush2.msra.mxu0 0.0
    %815 = vmatprep.subr.mxu0 0.0
    %816 = vmatpush2.msra.mxu0 0.0
    %817 = vmatprep.subr.mxu0 0.0
    %818 = vmatpush2.msra.mxu0 0.0
    %819 = vmatprep.subr.mxu0 0.0
    %820 = vmatpush2.msra.mxu0 0.0
    %821 = vmatprep.subr.mxu0 0.0
    %822 = vmatpush2.msra.mxu0 0.0
    %823 = vmatprep.subr.mxu0 0.0
    %824 = vmatpush2.msra.mxu0 0.0
    %825 = vmatprep.subr.mxu0 0.0
    %826 = vmatpush2.msra.mxu0 0.0
    %827 = vmatprep.subr.mxu0 0.0
    %828 = vmatpush2.msra.mxu0 0.0
    %829 = vmatprep.subr.mxu0 0.0
    %830 = vmatpush2.msra.mxu0 0.0
    %831 = vmatprep.mubr.f32.mxu0 0.0
    %v832 = vand.u32 %v684, 4294901760
    %833 = vmatmul.mubr.f32.gmra.mxu0 %v832
    %v834 = vpop.f32.mrf.mxu0
    %v835 = vadd.f32 %v759, %v834
    %v836 = vpop.f32.mrf.mxu0
    %837 = vdwg.mxu0
    %838 = vmatprep.subr.mxu0 0.0
    %839 = vmatpush1.msra.mxu0 0.0
    %840 = vmatprep.subr.mxu0 0.0
    %841 = vmatpush1.msra.mxu0 0.0
    %842 = vmatprep.subr.mxu0 0.0
    %843 = vmatpush1.msra.mxu0 0.0
    %844 = vmatprep.subr.mxu0 0.0
    %845 = vmatpush1.msra.mxu0 0.0
    %846 = vmatprep.subr.mxu0 0.0
    %847 = vmatpush1.msra.mxu0 0.0
    %848 = vmatprep.subr.mxu0 0.0
    %849 = vmatpush1.msra.mxu0 0.0
    %850 = vmatprep.subr.mxu0 0.0
    %851 = vmatpush1.msra.mxu0 0.0
    %852 = vmatprep.subr.mxu0 0.0
    %853 = vmatpush1.msra.mxu0 0.0
    %854 = vmatprep.subr.mxu0 0.0
    %855 = vmatpush1.msra.mxu0 0.0
    %856 = vmatprep.subr.mxu0 0.0
    %857 = vmatpush1.msra.mxu0 0.0
    %858 = vmatprep.subr.mxu0 0.0
    %859 = vmatpush1.msra.mxu0 0.0
    %860 = vmatprep.subr.mxu0 0.0
    %861 = vmatpush1.msra.mxu0 0.0
    %862 = vmatprep.subr.mxu0 0.0
    %863 = vmatpush1.msra.mxu0 0.0
    %864 = vmatprep.subr.mxu0 0.0
    %865 = vmatpush1.msra.mxu0 0.0
    %866 = vmatprep.subr.mxu0 0.0
    %867 = vmatpush1.msra.mxu0 0.0
    %868 = vmatprep.subr.mxu0 0.0
    %v869 = vand.u32 %v40, 4294901760
    %v870 = vsub.f32 %v40, %v869
    %871 = vmatpush1.msra.mxu0 %v870
    %872 = vmatprep.subr.mxu0 0.0
    %873 = vmatpush2.msra.mxu0 0.0
    %874 = vmatprep.subr.mxu0 0.0
    %875 = vmatpush2.msra.mxu0 0.0
    %876 = vmatprep.subr.mxu0 0.0
    %877 = vmatpush2.msra.mxu0 0.0
    %878 = vmatprep.subr.mxu0 0.0
    %879 = vmatpush2.msra.mxu0 0.0
    %880 = vmatprep.subr.mxu0 0.0
    %881 = vmatpush2.msra.mxu0 0.0
    %882 = vmatprep.subr.mxu0 0.0
    %883 = vmatpush2.msra.mxu0 0.0
    %884 = vmatprep.subr.mxu0 0.0
    %885 = vmatpush2.msra.mxu0 0.0
    %886 = vmatprep.subr.mxu0 0.0
    %887 = vmatpush2.msra.mxu0 0.0
    %888 = vmatprep.subr.mxu0 0.0
    %889 = vmatpush2.msra.mxu0 0.0
    %890 = vmatprep.subr.mxu0 0.0
    %891 = vmatpush2.msra.mxu0 0.0
    %892 = vmatprep.subr.mxu0 0.0
    %893 = vmatpush2.msra.mxu0 0.0
    %894 = vmatprep.subr.mxu0 0.0
    %895 = vmatpush2.msra.mxu0 0.0
    %896 = vmatprep.subr.mxu0 0.0
    %897 = vmatpush2.msra.mxu0 0.0
    %898 = vmatprep.subr.mxu0 0.0
    %899 = vmatpush2.msra.mxu0 0.0
    %900 = vmatprep.subr.mxu0 0.0
    %901 = vmatpush2.msra.mxu0 0.0
    %902 = vmatprep.subr.mxu0 0.0
    %903 = vmatpush2.msra.mxu0 0.0
    %904 = vmatprep.mubr.f32.mxu0 0.0
    %v905 = vand.u32 %v684, 4294901760
    %v906 = vsub.f32 %v684, %v905
    %907 = vmatmul.mubr.f32.gmra.mxu0 %v906
    %v908 = vpop.f32.mrf.mxu0
    %v909 = vadd.f32 %v835, %v908
    %v910 = vpop.f32.mrf.mxu0
    %911 = vdwg.mxu0
    %912 = vmatprep.subr.mxu0 0.0
    %913 = vmatpush1.msra.mxu0 0.0
    %914 = vmatprep.subr.mxu0 0.0
    %915 = vmatpush1.msra.mxu0 0.0
    %916 = vmatprep.subr.mxu0 0.0
    %917 = vmatpush1.msra.mxu0 0.0
    %918 = vmatprep.subr.mxu0 0.0
    %919 = vmatpush1.msra.mxu0 0.0
    %920 = vmatprep.subr.mxu0 0.0
    %921 = vmatpush1.msra.mxu0 0.0
    %922 = vmatprep.subr.mxu0 0.0
    %923 = vmatpush1.msra.mxu0 0.0
    %924 = vmatprep.subr.mxu0 0.0
    %925 = vmatpush1.msra.mxu0 0.0
    %926 = vmatprep.subr.mxu0 0.0
    %927 = vmatpush1.msra.mxu0 0.0
    %928 = vmatprep.subr.mxu0 0.0
    %929 = vmatpush1.msra.mxu0 0.0
    %930 = vmatprep.subr.mxu0 0.0
    %931 = vmatpush1.msra.mxu0 0.0
    %932 = vmatprep.subr.mxu0 0.0
    %933 = vmatpush1.msra.mxu0 0.0
    %934 = vmatprep.subr.mxu0 0.0
    %935 = vmatpush1.msra.mxu0 0.0
    %936 = vmatprep.subr.mxu0 0.0
    %937 = vmatpush1.msra.mxu0 0.0
    %938 = vmatprep.subr.mxu0 0.0
    %939 = vmatpush1.msra.mxu0 0.0
    %940 = vmatprep.subr.mxu0 0.0
    %941 = vmatpush1.msra.mxu0 0.0
    %942 = vmatprep.subr.mxu0 0.0
    %v943 = vand.u32 %v40, 4294901760
    %944 = vmatpush1.msra.mxu0 %v943
    %945 = vmatprep.subr.mxu0 0.0
    %946 = vmatpush2.msra.mxu0 0.0
    %947 = vmatprep.subr.mxu0 0.0
    %948 = vmatpush2.msra.mxu0 0.0
    %949 = vmatprep.subr.mxu0 0.0
    %950 = vmatpush2.msra.mxu0 0.0
    %951 = vmatprep.subr.mxu0 0.0
    %952 = vmatpush2.msra.mxu0 0.0
    %953 = vmatprep.subr.mxu0 0.0
    %954 = vmatpush2.msra.mxu0 0.0
    %955 = vmatprep.subr.mxu0 0.0
    %956 = vmatpush2.msra.mxu0 0.0
    %957 = vmatprep.subr.mxu0 0.0
    %958 = vmatpush2.msra.mxu0 0.0
    %959 = vmatprep.subr.mxu0 0.0
    %960 = vmatpush2.msra.mxu0 0.0
    %961 = vmatprep.subr.mxu0 0.0
    %962 = vmatpush2.msra.mxu0 0.0
    %963 = vmatprep.subr.mxu0 0.0
    %964 = vmatpush2.msra.mxu0 0.0
    %965 = vmatprep.subr.mxu0 0.0
    %966 = vmatpush2.msra.mxu0 0.0
    %967 = vmatprep.subr.mxu0 0.0
    %968 = vmatpush2.msra.mxu0 0.0
    %969 = vmatprep.subr.mxu0 0.0
    %970 = vmatpush2.msra.mxu0 0.0
    %971 = vmatprep.subr.mxu0 0.0
    %972 = vmatpush2.msra.mxu0 0.0
    %973 = vmatprep.subr.mxu0 0.0
    %974 = vmatpush2.msra.mxu0 0.0
    %975 = vmatprep.subr.mxu0 0.0
    %976 = vmatpush2.msra.mxu0 0.0
    %977 = vmatprep.mubr.f32.mxu0 0.0
    %v978 = vand.u32 %v684, 4294901760
    %v979 = vsub.f32 %v684, %v978
    %v980 = vand.u32 %v979, 4294901760
    %981 = vmatmul.mubr.f32.gmra.mxu0 %v980
    %v982 = vpop.f32.mrf.mxu0
    %v983 = vadd.f32 %v909, %v982
    %v984 = vpop.f32.mrf.mxu0
    %985 = vdwg.mxu0
    %986 = vmatprep.subr.mxu0 0.0
    %987 = vmatpush1.msra.mxu0 0.0
    %988 = vmatprep.subr.mxu0 0.0
    %989 = vmatpush1.msra.mxu0 0.0
    %990 = vmatprep.subr.mxu0 0.0
    %991 = vmatpush1.msra.mxu0 0.0
    %992 = vmatprep.subr.mxu0 0.0
    %993 = vmatpush1.msra.mxu0 0.0
    %994 = vmatprep.subr.mxu0 0.0
    %995 = vmatpush1.msra.mxu0 0.0
    %996 = vmatprep.subr.mxu0 0.0
    %997 = vmatpush1.msra.mxu0 0.0
    %998 = vmatprep.subr.mxu0 0.0
    %999 = vmatpush1.msra.mxu0 0.0
    %1000 = vmatprep.subr.mxu0 0.0
    %1001 = vmatpush1.msra.mxu0 0.0
    %1002 = vmatprep.subr.mxu0 0.0
    %1003 = vmatpush1.msra.mxu0 0.0
    %1004 = vmatprep.subr.mxu0 0.0
    %1005 = vmatpush1.msra.mxu0 0.0
    %1006 = vmatprep.subr.mxu0 0.0
    %1007 = vmatpush1.msra.mxu0 0.0
    %1008 = vmatprep.subr.mxu0 0.0
    %1009 = vmatpush1.msra.mxu0 0.0
    %1010 = vmatprep.subr.mxu0 0.0
    %1011 = vmatpush1.msra.mxu0 0.0
    %1012 = vmatprep.subr.mxu0 0.0
    %1013 = vmatpush1.msra.mxu0 0.0
    %1014 = vmatprep.subr.mxu0 0.0
    %1015 = vmatpush1.msra.mxu0 0.0
    %1016 = vmatprep.subr.mxu0 0.0
    %v1017 = vand.u32 %v40, 4294901760
    %v1018 = vsub.f32 %v40, %v1017
    %v1019 = vand.u32 %v1018, 4294901760
    %1020 = vmatpush1.msra.mxu0 %v1019
    %1021 = vmatprep.subr.mxu0 0.0
    %1022 = vmatpush2.msra.mxu0 0.0
    %1023 = vmatprep.subr.mxu0 0.0
    %1024 = vmatpush2.msra.mxu0 0.0
    %1025 = vmatprep.subr.mxu0 0.0
    %1026 = vmatpush2.msra.mxu0 0.0
    %1027 = vmatprep.subr.mxu0 0.0
    %1028 = vmatpush2.msra.mxu0 0.0
    %1029 = vmatprep.subr.mxu0 0.0
    %1030 = vmatpush2.msra.mxu0 0.0
    %1031 = vmatprep.subr.mxu0 0.0
    %1032 = vmatpush2.msra.mxu0 0.0
    %1033 = vmatprep.subr.mxu0 0.0
    %1034 = vmatpush2.msra.mxu0 0.0
    %1035 = vmatprep.subr.mxu0 0.0
    %1036 = vmatpush2.msra.mxu0 0.0
    %1037 = vmatprep.subr.mxu0 0.0
    %1038 = vmatpush2.msra.mxu0 0.0
    %1039 = vmatprep.subr.mxu0 0.0
    %1040 = vmatpush2.msra.mxu0 0.0
    %1041 = vmatprep.subr.mxu0 0.0
    %1042 = vmatpush2.msra.mxu0 0.0
    %1043 = vmatprep.subr.mxu0 0.0
    %1044 = vmatpush2.msra.mxu0 0.0
    %1045 = vmatprep.subr.mxu0 0.0
    %1046 = vmatpush2.msra.mxu0 0.0
    %1047 = vmatprep.subr.mxu0 0.0
    %1048 = vmatpush2.msra.mxu0 0.0
    %1049 = vmatprep.subr.mxu0 0.0
    %1050 = vmatpush2.msra.mxu0 0.0
    %1051 = vmatprep.subr.mxu0 0.0
    %1052 = vmatpush2.msra.mxu0 0.0
    %1053 = vmatprep.mubr.f32.mxu0 0.0
    %v1054 = vand.u32 %v684, 4294901760
    %1055 = vmatmul.mubr.f32.gmra.mxu0 %v1054
    %v1056 = vpop.f32.mrf.mxu0
    %v1057 = vadd.f32 %v983, %v1056
    %v1058 = vpop.f32.mrf.mxu0
    %1059 = vdwg.mxu0
    %1060 = vmatprep.subr.mxu0 0.0
    %1061 = vmatpush1.msra.mxu0 0.0
    %1062 = vmatprep.subr.mxu0 0.0
    %1063 = vmatpush1.msra.mxu0 0.0
    %1064 = vmatprep.subr.mxu0 0.0
    %1065 = vmatpush1.msra.mxu0 0.0
    %1066 = vmatprep.subr.mxu0 0.0
    %1067 = vmatpush1.msra.mxu0 0.0
    %1068 = vmatprep.subr.mxu0 0.0
    %1069 = vmatpush1.msra.mxu0 0.0
    %1070 = vmatprep.subr.mxu0 0.0
    %1071 = vmatpush1.msra.mxu0 0.0
    %1072 = vmatprep.subr.mxu0 0.0
    %1073 = vmatpush1.msra.mxu0 0.0
    %1074 = vmatprep.subr.mxu0 0.0
    %1075 = vmatpush1.msra.mxu0 0.0
    %1076 = vmatprep.subr.mxu0 0.0
    %1077 = vmatpush1.msra.mxu0 0.0
    %1078 = vmatprep.subr.mxu0 0.0
    %1079 = vmatpush1.msra.mxu0 0.0
    %1080 = vmatprep.subr.mxu0 0.0
    %1081 = vmatpush1.msra.mxu0 0.0
    %1082 = vmatprep.subr.mxu0 0.0
    %1083 = vmatpush1.msra.mxu0 0.0
    %1084 = vmatprep.subr.mxu0 0.0
    %1085 = vmatpush1.msra.mxu0 0.0
    %1086 = vmatprep.subr.mxu0 0.0
    %1087 = vmatpush1.msra.mxu0 0.0
    %1088 = vmatprep.subr.mxu0 0.0
    %1089 = vmatpush1.msra.mxu0 0.0
    %1090 = vmatprep.subr.mxu0 0.0
    %v1091 = vand.u32 %v40, 4294901760
    %1092 = vmatpush1.msra.mxu0 %v1091
    %1093 = vmatprep.subr.mxu0 0.0
    %1094 = vmatpush2.msra.mxu0 0.0
    %1095 = vmatprep.subr.mxu0 0.0
    %1096 = vmatpush2.msra.mxu0 0.0
    %1097 = vmatprep.subr.mxu0 0.0
    %1098 = vmatpush2.msra.mxu0 0.0
    %1099 = vmatprep.subr.mxu0 0.0
    %1100 = vmatpush2.msra.mxu0 0.0
    %1101 = vmatprep.subr.mxu0 0.0
    %1102 = vmatpush2.msra.mxu0 0.0
    %1103 = vmatprep.subr.mxu0 0.0
    %1104 = vmatpush2.msra.mxu0 0.0
    %1105 = vmatprep.subr.mxu0 0.0
    %1106 = vmatpush2.msra.mxu0 0.0
    %1107 = vmatprep.subr.mxu0 0.0
    %1108 = vmatpush2.msra.mxu0 0.0
    %1109 = vmatprep.subr.mxu0 0.0
    %1110 = vmatpush2.msra.mxu0 0.0
    %1111 = vmatprep.subr.mxu0 0.0
    %1112 = vmatpush2.msra.mxu0 0.0
    %1113 = vmatprep.subr.mxu0 0.0
    %1114 = vmatpush2.msra.mxu0 0.0
    %1115 = vmatprep.subr.mxu0 0.0
    %1116 = vmatpush2.msra.mxu0 0.0
    %1117 = vmatprep.subr.mxu0 0.0
    %1118 = vmatpush2.msra.mxu0 0.0
    %1119 = vmatprep.subr.mxu0 0.0
    %1120 = vmatpush2.msra.mxu0 0.0
    %1121 = vmatprep.subr.mxu0 0.0
    %1122 = vmatpush2.msra.mxu0 0.0
    %1123 = vmatprep.subr.mxu0 0.0
    %1124 = vmatpush2.msra.mxu0 0.0
    %1125 = vmatprep.mubr.f32.mxu0 0.0
    %v1126 = vand.u32 %v684, 4294901760
    %1127 = vmatmul.mubr.f32.gmra.mxu0 %v1126
    %v1128 = vpop.f32.mrf.mxu0
    %v1129 = vadd.f32 %v1057, %v1128
    %v1130 = vpop.f32.mrf.mxu0
    %1131 = vdwg.mxu0
    %v1132 = vsub.f32 %v21, %v1129
    %v1133 = vmul.f32 %v1132, %v1132
    %1134 = vmatprep.subr.mxu0 0.0
    %v1135 = vand.u32 %v39, 4294901760
    %1136 = vmatpush1.msra.mxu0 %v1135
    %1137 = vmatprep.subr.mxu0 0.0
    %v1138 = vand.u32 %v38, 4294901760
    %1139 = vmatpush1.msra.mxu0 %v1138
    %1140 = vmatprep.subr.mxu0 0.0
    %v1141 = vand.u32 %v37, 4294901760
    %1142 = vmatpush1.msra.mxu0 %v1141
    %1143 = vmatprep.subr.mxu0 0.0
    %v1144 = vand.u32 %v36, 4294901760
    %1145 = vmatpush1.msra.mxu0 %v1144
    %1146 = vmatprep.subr.mxu0 0.0
    %v1147 = vand.u32 %v35, 4294901760
    %1148 = vmatpush1.msra.mxu0 %v1147
    %1149 = vmatprep.subr.mxu0 0.0
    %v1150 = vand.u32 %v34, 4294901760
    %1151 = vmatpush1.msra.mxu0 %v1150
    %1152 = vmatprep.subr.mxu0 0.0
    %v1153 = vand.u32 %v33, 4294901760
    %1154 = vmatpush1.msra.mxu0 %v1153
    %1155 = vmatprep.subr.mxu0 0.0
    %v1156 = vand.u32 %v32, 4294901760
    %1157 = vmatpush1.msra.mxu0 %v1156
    %1158 = vmatprep.subr.mxu0 0.0
    %v1159 = vand.u32 %v31, 4294901760
    %1160 = vmatpush1.msra.mxu0 %v1159
    %1161 = vmatprep.subr.mxu0 0.0
    %v1162 = vand.u32 %v30, 4294901760
    %1163 = vmatpush1.msra.mxu0 %v1162
    %1164 = vmatprep.subr.mxu0 0.0
    %v1165 = vand.u32 %v29, 4294901760
    %1166 = vmatpush1.msra.mxu0 %v1165
    %1167 = vmatprep.subr.mxu0 0.0
    %v1168 = vand.u32 %v28, 4294901760
    %1169 = vmatpush1.msra.mxu0 %v1168
    %1170 = vmatprep.subr.mxu0 0.0
    %v1171 = vand.u32 %v27, 4294901760
    %1172 = vmatpush1.msra.mxu0 %v1171
    %1173 = vmatprep.subr.mxu0 0.0
    %v1174 = vand.u32 %v26, 4294901760
    %1175 = vmatpush1.msra.mxu0 %v1174
    %1176 = vmatprep.subr.mxu0 0.0
    %v1177 = vand.u32 %v25, 4294901760
    %1178 = vmatpush1.msra.mxu0 %v1177
    %1179 = vmatprep.subr.mxu0 0.0
    %v1180 = vand.u32 %v24, 4294901760
    %1181 = vmatpush1.msra.mxu0 %v1180
    %1182 = vmatprep.subr.mxu0 0.0
    %1183 = vmatpush2.msra.mxu0 0.0
    %1184 = vmatprep.subr.mxu0 0.0
    %1185 = vmatpush2.msra.mxu0 0.0
    %1186 = vmatprep.subr.mxu0 0.0
    %1187 = vmatpush2.msra.mxu0 0.0
    %1188 = vmatprep.subr.mxu0 0.0
    %1189 = vmatpush2.msra.mxu0 0.0
    %1190 = vmatprep.subr.mxu0 0.0
    %1191 = vmatpush2.msra.mxu0 0.0
    %1192 = vmatprep.subr.mxu0 0.0
    %1193 = vmatpush2.msra.mxu0 0.0
    %1194 = vmatprep.subr.mxu0 0.0
    %1195 = vmatpush2.msra.mxu0 0.0
    %1196 = vmatprep.subr.mxu0 0.0
    %1197 = vmatpush2.msra.mxu0 0.0
    %1198 = vmatprep.subr.mxu0 0.0
    %1199 = vmatpush2.msra.mxu0 0.0
    %1200 = vmatprep.subr.mxu0 0.0
    %1201 = vmatpush2.msra.mxu0 0.0
    %1202 = vmatprep.subr.mxu0 0.0
    %1203 = vmatpush2.msra.mxu0 0.0
    %1204 = vmatprep.subr.mxu0 0.0
    %1205 = vmatpush2.msra.mxu0 0.0
    %1206 = vmatprep.subr.mxu0 0.0
    %1207 = vmatpush2.msra.mxu0 0.0
    %1208 = vmatprep.subr.mxu0 0.0
    %1209 = vmatpush2.msra.mxu0 0.0
    %1210 = vmatprep.subr.mxu0 0.0
    %1211 = vmatpush2.msra.mxu0 0.0
    %1212 = vmatprep.subr.mxu0 0.0
    %1213 = vmatpush2.msra.mxu0 0.0
    %1214 = vmatprep.mubr.f32.mxu0 0.0
    %v1215 = vand.u32 %v1133, 4294901760
    %v1216 = vsub.f32 %v1133, %v1215
    %v1217 = vand.u32 %v1216, 4294901760
    %v1218 = vsub.f32 %v1216, %v1217
    %v1219 = vand.u32 %v1218, 4294901760
    %1220 = vmatmul.mubr.f32.gmra.mxu0 %v1219
    %v1221 = vpop.f32.mrf.mxu0
    %v1222 = vadd.f32 0.0, %v1221
    %v1223 = vpop.f32.mrf.mxu0
    %1224 = vdwg.mxu0
    %1225 = vmatprep.subr.mxu0 0.0
    %v1226 = vand.u32 %v39, 4294901760
    %v1227 = vsub.f32 %v39, %v1226
    %v1228 = vand.u32 %v1227, 4294901760
    %v1229 = vsub.f32 %v1227, %v1228
    %v1230 = vand.u32 %v1229, 4294901760
    %1231 = vmatpush1.msra.mxu0 %v1230
    %1232 = vmatprep.subr.mxu0 0.0
    %v1233 = vand.u32 %v38, 4294901760
    %v1234 = vsub.f32 %v38, %v1233
    %v1235 = vand.u32 %v1234, 4294901760
    %v1236 = vsub.f32 %v1234, %v1235
    %v1237 = vand.u32 %v1236, 4294901760
    %1238 = vmatpush1.msra.mxu0 %v1237
    %1239 = vmatprep.subr.mxu0 0.0
    %v1240 = vand.u32 %v37, 4294901760
    %v1241 = vsub.f32 %v37, %v1240
    %v1242 = vand.u32 %v1241, 4294901760
    %v1243 = vsub.f32 %v1241, %v1242
    %v1244 = vand.u32 %v1243, 4294901760
    %1245 = vmatpush1.msra.mxu0 %v1244
    %1246 = vmatprep.subr.mxu0 0.0
    %v1247 = vand.u32 %v36, 4294901760
    %v1248 = vsub.f32 %v36, %v1247
    %v1249 = vand.u32 %v1248, 4294901760
    %v1250 = vsub.f32 %v1248, %v1249
    %v1251 = vand.u32 %v1250, 4294901760
    %1252 = vmatpush1.msra.mxu0 %v1251
    %1253 = vmatprep.subr.mxu0 0.0
    %v1254 = vand.u32 %v35, 4294901760
    %v1255 = vsub.f32 %v35, %v1254
    %v1256 = vand.u32 %v1255, 4294901760
    %v1257 = vsub.f32 %v1255, %v1256
    %v1258 = vand.u32 %v1257, 4294901760
    %1259 = vmatpush1.msra.mxu0 %v1258
    %1260 = vmatprep.subr.mxu0 0.0
    %v1261 = vand.u32 %v34, 4294901760
    %v1262 = vsub.f32 %v34, %v1261
    %v1263 = vand.u32 %v1262, 4294901760
    %v1264 = vsub.f32 %v1262, %v1263
    %v1265 = vand.u32 %v1264, 4294901760
    %1266 = vmatpush1.msra.mxu0 %v1265
    %1267 = vmatprep.subr.mxu0 0.0
    %v1268 = vand.u32 %v33, 4294901760
    %v1269 = vsub.f32 %v33, %v1268
    %v1270 = vand.u32 %v1269, 4294901760
    %v1271 = vsub.f32 %v1269, %v1270
    %v1272 = vand.u32 %v1271, 4294901760
    %1273 = vmatpush1.msra.mxu0 %v1272
    %1274 = vmatprep.subr.mxu0 0.0
    %v1275 = vand.u32 %v32, 4294901760
    %v1276 = vsub.f32 %v32, %v1275
    %v1277 = vand.u32 %v1276, 4294901760
    %v1278 = vsub.f32 %v1276, %v1277
    %v1279 = vand.u32 %v1278, 4294901760
    %1280 = vmatpush1.msra.mxu0 %v1279
    %1281 = vmatprep.subr.mxu0 0.0
    %v1282 = vand.u32 %v31, 4294901760
    %v1283 = vsub.f32 %v31, %v1282
    %v1284 = vand.u32 %v1283, 4294901760
    %v1285 = vsub.f32 %v1283, %v1284
    %v1286 = vand.u32 %v1285, 4294901760
    %1287 = vmatpush1.msra.mxu0 %v1286
    %1288 = vmatprep.subr.mxu0 0.0
    %v1289 = vand.u32 %v30, 4294901760
    %v1290 = vsub.f32 %v30, %v1289
    %v1291 = vand.u32 %v1290, 4294901760
    %v1292 = vsub.f32 %v1290, %v1291
    %v1293 = vand.u32 %v1292, 4294901760
    %1294 = vmatpush1.msra.mxu0 %v1293
    %1295 = vmatprep.subr.mxu0 0.0
    %v1296 = vand.u32 %v29, 4294901760
    %v1297 = vsub.f32 %v29, %v1296
    %v1298 = vand.u32 %v1297, 4294901760
    %v1299 = vsub.f32 %v1297, %v1298
    %v1300 = vand.u32 %v1299, 4294901760
    %1301 = vmatpush1.msra.mxu0 %v1300
    %1302 = vmatprep.subr.mxu0 0.0
    %v1303 = vand.u32 %v28, 4294901760
    %v1304 = vsub.f32 %v28, %v1303
    %v1305 = vand.u32 %v1304, 4294901760
    %v1306 = vsub.f32 %v1304, %v1305
    %v1307 = vand.u32 %v1306, 4294901760
    %1308 = vmatpush1.msra.mxu0 %v1307
    %1309 = vmatprep.subr.mxu0 0.0
    %v1310 = vand.u32 %v27, 4294901760
    %v1311 = vsub.f32 %v27, %v1310
    %v1312 = vand.u32 %v1311, 4294901760
    %v1313 = vsub.f32 %v1311, %v1312
    %v1314 = vand.u32 %v1313, 4294901760
    %1315 = vmatpush1.msra.mxu0 %v1314
    %1316 = vmatprep.subr.mxu0 0.0
    %v1317 = vand.u32 %v26, 4294901760
    %v1318 = vsub.f32 %v26, %v1317
    %v1319 = vand.u32 %v1318, 4294901760
    %v1320 = vsub.f32 %v1318, %v1319
    %v1321 = vand.u32 %v1320, 4294901760
    %1322 = vmatpush1.msra.mxu0 %v1321
    %1323 = vmatprep.subr.mxu0 0.0
    %v1324 = vand.u32 %v25, 4294901760
    %v1325 = vsub.f32 %v25, %v1324
    %v1326 = vand.u32 %v1325, 4294901760
    %v1327 = vsub.f32 %v1325, %v1326
    %v1328 = vand.u32 %v1327, 4294901760
    %1329 = vmatpush1.msra.mxu0 %v1328
    %1330 = vmatprep.subr.mxu0 0.0
    %v1331 = vand.u32 %v24, 4294901760
    %v1332 = vsub.f32 %v24, %v1331
    %v1333 = vand.u32 %v1332, 4294901760
    %v1334 = vsub.f32 %v1332, %v1333
    %v1335 = vand.u32 %v1334, 4294901760
    %1336 = vmatpush1.msra.mxu0 %v1335
    %1337 = vmatprep.subr.mxu0 0.0
    %1338 = vmatpush2.msra.mxu0 0.0
    %1339 = vmatprep.subr.mxu0 0.0
    %1340 = vmatpush2.msra.mxu0 0.0
    %1341 = vmatprep.subr.mxu0 0.0
    %1342 = vmatpush2.msra.mxu0 0.0
    %1343 = vmatprep.subr.mxu0 0.0
    %1344 = vmatpush2.msra.mxu0 0.0
    %1345 = vmatprep.subr.mxu0 0.0
    %1346 = vmatpush2.msra.mxu0 0.0
    %1347 = vmatprep.subr.mxu0 0.0
    %1348 = vmatpush2.msra.mxu0 0.0
    %1349 = vmatprep.subr.mxu0 0.0
    %1350 = vmatpush2.msra.mxu0 0.0
    %1351 = vmatprep.subr.mxu0 0.0
    %1352 = vmatpush2.msra.mxu0 0.0
    %1353 = vmatprep.subr.mxu0 0.0
    %1354 = vmatpush2.msra.mxu0 0.0
    %1355 = vmatprep.subr.mxu0 0.0
    %1356 = vmatpush2.msra.mxu0 0.0
    %1357 = vmatprep.subr.mxu0 0.0
    %1358 = vmatpush2.msra.mxu0 0.0
    %1359 = vmatprep.subr.mxu0 0.0
    %1360 = vmatpush2.msra.mxu0 0.0
    %1361 = vmatprep.subr.mxu0 0.0
    %1362 = vmatpush2.msra.mxu0 0.0
    %1363 = vmatprep.subr.mxu0 0.0
    %1364 = vmatpush2.msra.mxu0 0.0
    %1365 = vmatprep.subr.mxu0 0.0
    %1366 = vmatpush2.msra.mxu0 0.0
    %1367 = vmatprep.subr.mxu0 0.0
    %1368 = vmatpush2.msra.mxu0 0.0
    %1369 = vmatprep.mubr.f32.mxu0 0.0
    %v1370 = vand.u32 %v1133, 4294901760
    %1371 = vmatmul.mubr.f32.gmra.mxu0 %v1370
    %v1372 = vpop.f32.mrf.mxu0
    %v1373 = vadd.f32 %v1222, %v1372
    %v1374 = vpop.f32.mrf.mxu0
    %1375 = vdwg.mxu0
    %1376 = vmatprep.subr.mxu0 0.0
    %v1377 = vand.u32 %v39, 4294901760
    %v1378 = vsub.f32 %v39, %v1377
    %1379 = vmatpush1.msra.mxu0 %v1378
    %1380 = vmatprep.subr.mxu0 0.0
    %v1381 = vand.u32 %v38, 4294901760
    %v1382 = vsub.f32 %v38, %v1381
    %1383 = vmatpush1.msra.mxu0 %v1382
    %1384 = vmatprep.subr.mxu0 0.0
    %v1385 = vand.u32 %v37, 4294901760
    %v1386 = vsub.f32 %v37, %v1385
    %1387 = vmatpush1.msra.mxu0 %v1386
    %1388 = vmatprep.subr.mxu0 0.0
    %v1389 = vand.u32 %v36, 4294901760
    %v1390 = vsub.f32 %v36, %v1389
    %1391 = vmatpush1.msra.mxu0 %v1390
    %1392 = vmatprep.subr.mxu0 0.0
    %v1393 = vand.u32 %v35, 4294901760
    %v1394 = vsub.f32 %v35, %v1393
    %1395 = vmatpush1.msra.mxu0 %v1394
    %1396 = vmatprep.subr.mxu0 0.0
    %v1397 = vand.u32 %v34, 4294901760
    %v1398 = vsub.f32 %v34, %v1397
    %1399 = vmatpush1.msra.mxu0 %v1398
    %1400 = vmatprep.subr.mxu0 0.0
    %v1401 = vand.u32 %v33, 4294901760
    %v1402 = vsub.f32 %v33, %v1401
    %1403 = vmatpush1.msra.mxu0 %v1402
    %1404 = vmatprep.subr.mxu0 0.0
    %v1405 = vand.u32 %v32, 4294901760
    %v1406 = vsub.f32 %v32, %v1405
    %1407 = vmatpush1.msra.mxu0 %v1406
    %1408 = vmatprep.subr.mxu0 0.0
    %v1409 = vand.u32 %v31, 4294901760
    %v1410 = vsub.f32 %v31, %v1409
    %1411 = vmatpush1.msra.mxu0 %v1410
    %1412 = vmatprep.subr.mxu0 0.0
    %v1413 = vand.u32 %v30, 4294901760
    %v1414 = vsub.f32 %v30, %v1413
    %1415 = vmatpush1.msra.mxu0 %v1414
    %1416 = vmatprep.subr.mxu0 0.0
    %v1417 = vand.u32 %v29, 4294901760
    %v1418 = vsub.f32 %v29, %v1417
    %1419 = vmatpush1.msra.mxu0 %v1418
    %1420 = vmatprep.subr.mxu0 0.0
    %v1421 = vand.u32 %v28, 4294901760
    %v1422 = vsub.f32 %v28, %v1421
    %1423 = vmatpush1.msra.mxu0 %v1422
    %1424 = vmatprep.subr.mxu0 0.0
    %v1425 = vand.u32 %v27, 4294901760
    %v1426 = vsub.f32 %v27, %v1425
    %1427 = vmatpush1.msra.mxu0 %v1426
    %1428 = vmatprep.subr.mxu0 0.0
    %v1429 = vand.u32 %v26, 4294901760
    %v1430 = vsub.f32 %v26, %v1429
    %1431 = vmatpush1.msra.mxu0 %v1430
    %1432 = vmatprep.subr.mxu0 0.0
    %v1433 = vand.u32 %v25, 4294901760
    %v1434 = vsub.f32 %v25, %v1433
    %1435 = vmatpush1.msra.mxu0 %v1434
    %1436 = vmatprep.subr.mxu0 0.0
    %v1437 = vand.u32 %v24, 4294901760
    %v1438 = vsub.f32 %v24, %v1437
    %1439 = vmatpush1.msra.mxu0 %v1438
    %1440 = vmatprep.subr.mxu0 0.0
    %1441 = vmatpush2.msra.mxu0 0.0
    %1442 = vmatprep.subr.mxu0 0.0
    %1443 = vmatpush2.msra.mxu0 0.0
    %1444 = vmatprep.subr.mxu0 0.0
    %1445 = vmatpush2.msra.mxu0 0.0
    %1446 = vmatprep.subr.mxu0 0.0
    %1447 = vmatpush2.msra.mxu0 0.0
    %1448 = vmatprep.subr.mxu0 0.0
    %1449 = vmatpush2.msra.mxu0 0.0
    %1450 = vmatprep.subr.mxu0 0.0
    %1451 = vmatpush2.msra.mxu0 0.0
    %1452 = vmatprep.subr.mxu0 0.0
    %1453 = vmatpush2.msra.mxu0 0.0
    %1454 = vmatprep.subr.mxu0 0.0
    %1455 = vmatpush2.msra.mxu0 0.0
    %1456 = vmatprep.subr.mxu0 0.0
    %1457 = vmatpush2.msra.mxu0 0.0
    %1458 = vmatprep.subr.mxu0 0.0
    %1459 = vmatpush2.msra.mxu0 0.0
    %1460 = vmatprep.subr.mxu0 0.0
    %1461 = vmatpush2.msra.mxu0 0.0
    %1462 = vmatprep.subr.mxu0 0.0
    %1463 = vmatpush2.msra.mxu0 0.0
    %1464 = vmatprep.subr.mxu0 0.0
    %1465 = vmatpush2.msra.mxu0 0.0
    %1466 = vmatprep.subr.mxu0 0.0
    %1467 = vmatpush2.msra.mxu0 0.0
    %1468 = vmatprep.subr.mxu0 0.0
    %1469 = vmatpush2.msra.mxu0 0.0
    %1470 = vmatprep.subr.mxu0 0.0
    %1471 = vmatpush2.msra.mxu0 0.0
    %1472 = vmatprep.mubr.f32.mxu0 0.0
    %v1473 = vand.u32 %v1133, 4294901760
    %v1474 = vsub.f32 %v1133, %v1473
    %1475 = vmatmul.mubr.f32.gmra.mxu0 %v1474
    %v1476 = vpop.f32.mrf.mxu0
    %v1477 = vadd.f32 %v1373, %v1476
    %v1478 = vpop.f32.mrf.mxu0
    %1479 = vdwg.mxu0
    %1480 = vmatprep.subr.mxu0 0.0
    %v1481 = vand.u32 %v39, 4294901760
    %1482 = vmatpush1.msra.mxu0 %v1481
    %1483 = vmatprep.subr.mxu0 0.0
    %v1484 = vand.u32 %v38, 4294901760
    %1485 = vmatpush1.msra.mxu0 %v1484
    %1486 = vmatprep.subr.mxu0 0.0
    %v1487 = vand.u32 %v37, 4294901760
    %1488 = vmatpush1.msra.mxu0 %v1487
    %1489 = vmatprep.subr.mxu0 0.0
    %v1490 = vand.u32 %v36, 4294901760
    %1491 = vmatpush1.msra.mxu0 %v1490
    %1492 = vmatprep.subr.mxu0 0.0
    %v1493 = vand.u32 %v35, 4294901760
    %1494 = vmatpush1.msra.mxu0 %v1493
    %1495 = vmatprep.subr.mxu0 0.0
    %v1496 = vand.u32 %v34, 4294901760
    %1497 = vmatpush1.msra.mxu0 %v1496
    %1498 = vmatprep.subr.mxu0 0.0
    %v1499 = vand.u32 %v33, 4294901760
    %1500 = vmatpush1.msra.mxu0 %v1499
    %1501 = vmatprep.subr.mxu0 0.0
    %v1502 = vand.u32 %v32, 4294901760
    %1503 = vmatpush1.msra.mxu0 %v1502
    %1504 = vmatprep.subr.mxu0 0.0
    %v1505 = vand.u32 %v31, 4294901760
    %1506 = vmatpush1.msra.mxu0 %v1505
    %1507 = vmatprep.subr.mxu0 0.0
    %v1508 = vand.u32 %v30, 4294901760
    %1509 = vmatpush1.msra.mxu0 %v1508
    %1510 = vmatprep.subr.mxu0 0.0
    %v1511 = vand.u32 %v29, 4294901760
    %1512 = vmatpush1.msra.mxu0 %v1511
    %1513 = vmatprep.subr.mxu0 0.0
    %v1514 = vand.u32 %v28, 4294901760
    %1515 = vmatpush1.msra.mxu0 %v1514
    %1516 = vmatprep.subr.mxu0 0.0
    %v1517 = vand.u32 %v27, 4294901760
    %1518 = vmatpush1.msra.mxu0 %v1517
    %1519 = vmatprep.subr.mxu0 0.0
    %v1520 = vand.u32 %v26, 4294901760
    %1521 = vmatpush1.msra.mxu0 %v1520
    %1522 = vmatprep.subr.mxu0 0.0
    %v1523 = vand.u32 %v25, 4294901760
    %1524 = vmatpush1.msra.mxu0 %v1523
    %1525 = vmatprep.subr.mxu0 0.0
    %v1526 = vand.u32 %v24, 4294901760
    %1527 = vmatpush1.msra.mxu0 %v1526
    %1528 = vmatprep.subr.mxu0 0.0
    %1529 = vmatpush2.msra.mxu0 0.0
    %1530 = vmatprep.subr.mxu0 0.0
    %1531 = vmatpush2.msra.mxu0 0.0
    %1532 = vmatprep.subr.mxu0 0.0
    %1533 = vmatpush2.msra.mxu0 0.0
    %1534 = vmatprep.subr.mxu0 0.0
    %1535 = vmatpush2.msra.mxu0 0.0
    %1536 = vmatprep.subr.mxu0 0.0
    %1537 = vmatpush2.msra.mxu0 0.0
    %1538 = vmatprep.subr.mxu0 0.0
    %1539 = vmatpush2.msra.mxu0 0.0
    %1540 = vmatprep.subr.mxu0 0.0
    %1541 = vmatpush2.msra.mxu0 0.0
    %1542 = vmatprep.subr.mxu0 0.0
    %1543 = vmatpush2.msra.mxu0 0.0
    %1544 = vmatprep.subr.mxu0 0.0
    %1545 = vmatpush2.msra.mxu0 0.0
    %1546 = vmatprep.subr.mxu0 0.0
    %1547 = vmatpush2.msra.mxu0 0.0
    %1548 = vmatprep.subr.mxu0 0.0
    %1549 = vmatpush2.msra.mxu0 0.0
    %1550 = vmatprep.subr.mxu0 0.0
    %1551 = vmatpush2.msra.mxu0 0.0
    %1552 = vmatprep.subr.mxu0 0.0
    %1553 = vmatpush2.msra.mxu0 0.0
    %1554 = vmatprep.subr.mxu0 0.0
    %1555 = vmatpush2.msra.mxu0 0.0
    %1556 = vmatprep.subr.mxu0 0.0
    %1557 = vmatpush2.msra.mxu0 0.0
    %1558 = vmatprep.subr.mxu0 0.0
    %1559 = vmatpush2.msra.mxu0 0.0
    %1560 = vmatprep.mubr.f32.mxu0 0.0
    %v1561 = vand.u32 %v1133, 4294901760
    %v1562 = vsub.f32 %v1133, %v1561
    %v1563 = vand.u32 %v1562, 4294901760
    %1564 = vmatmul.mubr.f32.gmra.mxu0 %v1563
    %v1565 = vpop.f32.mrf.mxu0
    %v1566 = vadd.f32 %v1477, %v1565
    %v1567 = vpop.f32.mrf.mxu0
    %1568 = vdwg.mxu0
    %1569 = vmatprep.subr.mxu0 0.0
    %v1570 = vand.u32 %v39, 4294901760
    %v1571 = vsub.f32 %v39, %v1570
    %v1572 = vand.u32 %v1571, 4294901760
    %1573 = vmatpush1.msra.mxu0 %v1572
    %1574 = vmatprep.subr.mxu0 0.0
    %v1575 = vand.u32 %v38, 4294901760
    %v1576 = vsub.f32 %v38, %v1575
    %v1577 = vand.u32 %v1576, 4294901760
    %1578 = vmatpush1.msra.mxu0 %v1577
    %1579 = vmatprep.subr.mxu0 0.0
    %v1580 = vand.u32 %v37, 4294901760
    %v1581 = vsub.f32 %v37, %v1580
    %v1582 = vand.u32 %v1581, 4294901760
    %1583 = vmatpush1.msra.mxu0 %v1582
    %1584 = vmatprep.subr.mxu0 0.0
    %v1585 = vand.u32 %v36, 4294901760
    %v1586 = vsub.f32 %v36, %v1585
    %v1587 = vand.u32 %v1586, 4294901760
    %1588 = vmatpush1.msra.mxu0 %v1587
    %1589 = vmatprep.subr.mxu0 0.0
    %v1590 = vand.u32 %v35, 4294901760
    %v1591 = vsub.f32 %v35, %v1590
    %v1592 = vand.u32 %v1591, 4294901760
    %1593 = vmatpush1.msra.mxu0 %v1592
    %1594 = vmatprep.subr.mxu0 0.0
    %v1595 = vand.u32 %v34, 4294901760
    %v1596 = vsub.f32 %v34, %v1595
    %v1597 = vand.u32 %v1596, 4294901760
    %1598 = vmatpush1.msra.mxu0 %v1597
    %1599 = vmatprep.subr.mxu0 0.0
    %v1600 = vand.u32 %v33, 4294901760
    %v1601 = vsub.f32 %v33, %v1600
    %v1602 = vand.u32 %v1601, 4294901760
    %1603 = vmatpush1.msra.mxu0 %v1602
    %1604 = vmatprep.subr.mxu0 0.0
    %v1605 = vand.u32 %v32, 4294901760
    %v1606 = vsub.f32 %v32, %v1605
    %v1607 = vand.u32 %v1606, 4294901760
    %1608 = vmatpush1.msra.mxu0 %v1607
    %1609 = vmatprep.subr.mxu0 0.0
    %v1610 = vand.u32 %v31, 4294901760
    %v1611 = vsub.f32 %v31, %v1610
    %v1612 = vand.u32 %v1611, 4294901760
    %1613 = vmatpush1.msra.mxu0 %v1612
    %1614 = vmatprep.subr.mxu0 0.0
    %v1615 = vand.u32 %v30, 4294901760
    %v1616 = vsub.f32 %v30, %v1615
    %v1617 = vand.u32 %v1616, 4294901760
    %1618 = vmatpush1.msra.mxu0 %v1617
    %1619 = vmatprep.subr.mxu0 0.0
    %v1620 = vand.u32 %v29, 4294901760
    %v1621 = vsub.f32 %v29, %v1620
    %v1622 = vand.u32 %v1621, 4294901760
    %1623 = vmatpush1.msra.mxu0 %v1622
    %1624 = vmatprep.subr.mxu0 0.0
    %v1625 = vand.u32 %v28, 4294901760
    %v1626 = vsub.f32 %v28, %v1625
    %v1627 = vand.u32 %v1626, 4294901760
    %1628 = vmatpush1.msra.mxu0 %v1627
    %1629 = vmatprep.subr.mxu0 0.0
    %v1630 = vand.u32 %v27, 4294901760
    %v1631 = vsub.f32 %v27, %v1630
    %v1632 = vand.u32 %v1631, 4294901760
    %1633 = vmatpush1.msra.mxu0 %v1632
    %1634 = vmatprep.subr.mxu0 0.0
    %v1635 = vand.u32 %v26, 4294901760
    %v1636 = vsub.f32 %v26, %v1635
    %v1637 = vand.u32 %v1636, 4294901760
    %1638 = vmatpush1.msra.mxu0 %v1637
    %1639 = vmatprep.subr.mxu0 0.0
    %v1640 = vand.u32 %v25, 4294901760
    %v1641 = vsub.f32 %v25, %v1640
    %v1642 = vand.u32 %v1641, 4294901760
    %1643 = vmatpush1.msra.mxu0 %v1642
    %1644 = vmatprep.subr.mxu0 0.0
    %v1645 = vand.u32 %v24, 4294901760
    %v1646 = vsub.f32 %v24, %v1645
    %v1647 = vand.u32 %v1646, 4294901760
    %1648 = vmatpush1.msra.mxu0 %v1647
    %1649 = vmatprep.subr.mxu0 0.0
    %1650 = vmatpush2.msra.mxu0 0.0
    %1651 = vmatprep.subr.mxu0 0.0
    %1652 = vmatpush2.msra.mxu0 0.0
    %1653 = vmatprep.subr.mxu0 0.0
    %1654 = vmatpush2.msra.mxu0 0.0
    %1655 = vmatprep.subr.mxu0 0.0
    %1656 = vmatpush2.msra.mxu0 0.0
    %1657 = vmatprep.subr.mxu0 0.0
    %1658 = vmatpush2.msra.mxu0 0.0
    %1659 = vmatprep.subr.mxu0 0.0
    %1660 = vmatpush2.msra.mxu0 0.0
    %1661 = vmatprep.subr.mxu0 0.0
    %1662 = vmatpush2.msra.mxu0 0.0
    %1663 = vmatprep.subr.mxu0 0.0
    %1664 = vmatpush2.msra.mxu0 0.0
    %1665 = vmatprep.subr.mxu0 0.0
    %1666 = vmatpush2.msra.mxu0 0.0
    %1667 = vmatprep.subr.mxu0 0.0
    %1668 = vmatpush2.msra.mxu0 0.0
    %1669 = vmatprep.subr.mxu0 0.0
    %1670 = vmatpush2.msra.mxu0 0.0
    %1671 = vmatprep.subr.mxu0 0.0
    %1672 = vmatpush2.msra.mxu0 0.0
    %1673 = vmatprep.subr.mxu0 0.0
    %1674 = vmatpush2.msra.mxu0 0.0
    %1675 = vmatprep.subr.mxu0 0.0
    %1676 = vmatpush2.msra.mxu0 0.0
    %1677 = vmatprep.subr.mxu0 0.0
    %1678 = vmatpush2.msra.mxu0 0.0
    %1679 = vmatprep.subr.mxu0 0.0
    %1680 = vmatpush2.msra.mxu0 0.0
    %1681 = vmatprep.mubr.f32.mxu0 0.0
    %v1682 = vand.u32 %v1133, 4294901760
    %1683 = vmatmul.mubr.f32.gmra.mxu0 %v1682
    %v1684 = vpop.f32.mrf.mxu0
    %v1685 = vadd.f32 %v1566, %v1684
    %v1686 = vpop.f32.mrf.mxu0
    %1687 = vdwg.mxu0
    %1688 = vmatprep.subr.mxu0 0.0
    %v1689 = vand.u32 %v39, 4294901760
    %1690 = vmatpush1.msra.mxu0 %v1689
    %1691 = vmatprep.subr.mxu0 0.0
    %v1692 = vand.u32 %v38, 4294901760
    %1693 = vmatpush1.msra.mxu0 %v1692
    %1694 = vmatprep.subr.mxu0 0.0
    %v1695 = vand.u32 %v37, 4294901760
    %1696 = vmatpush1.msra.mxu0 %v1695
    %1697 = vmatprep.subr.mxu0 0.0
    %v1698 = vand.u32 %v36, 4294901760
    %1699 = vmatpush1.msra.mxu0 %v1698
    %1700 = vmatprep.subr.mxu0 0.0
    %v1701 = vand.u32 %v35, 4294901760
    %1702 = vmatpush1.msra.mxu0 %v1701
    %1703 = vmatprep.subr.mxu0 0.0
    %v1704 = vand.u32 %v34, 4294901760
    %1705 = vmatpush1.msra.mxu0 %v1704
    %1706 = vmatprep.subr.mxu0 0.0
    %v1707 = vand.u32 %v33, 4294901760
    %1708 = vmatpush1.msra.mxu0 %v1707
    %1709 = vmatprep.subr.mxu0 0.0
    %v1710 = vand.u32 %v32, 4294901760
    %1711 = vmatpush1.msra.mxu0 %v1710
    %1712 = vmatprep.subr.mxu0 0.0
    %v1713 = vand.u32 %v31, 4294901760
    %1714 = vmatpush1.msra.mxu0 %v1713
    %1715 = vmatprep.subr.mxu0 0.0
    %v1716 = vand.u32 %v30, 4294901760
    %1717 = vmatpush1.msra.mxu0 %v1716
    %1718 = vmatprep.subr.mxu0 0.0
    %v1719 = vand.u32 %v29, 4294901760
    %1720 = vmatpush1.msra.mxu0 %v1719
    %1721 = vmatprep.subr.mxu0 0.0
    %v1722 = vand.u32 %v28, 4294901760
    %1723 = vmatpush1.msra.mxu0 %v1722
    %1724 = vmatprep.subr.mxu0 0.0
    %v1725 = vand.u32 %v27, 4294901760
    %1726 = vmatpush1.msra.mxu0 %v1725
    %1727 = vmatprep.subr.mxu0 0.0
    %v1728 = vand.u32 %v26, 4294901760
    %1729 = vmatpush1.msra.mxu0 %v1728
    %1730 = vmatprep.subr.mxu0 0.0
    %v1731 = vand.u32 %v25, 4294901760
    %1732 = vmatpush1.msra.mxu0 %v1731
    %1733 = vmatprep.subr.mxu0 0.0
    %v1734 = vand.u32 %v24, 4294901760
    %1735 = vmatpush1.msra.mxu0 %v1734
    %1736 = vmatprep.subr.mxu0 0.0
    %1737 = vmatpush2.msra.mxu0 0.0
    %1738 = vmatprep.subr.mxu0 0.0
    %1739 = vmatpush2.msra.mxu0 0.0
    %1740 = vmatprep.subr.mxu0 0.0
    %1741 = vmatpush2.msra.mxu0 0.0
    %1742 = vmatprep.subr.mxu0 0.0
    %1743 = vmatpush2.msra.mxu0 0.0
    %1744 = vmatprep.subr.mxu0 0.0
    %1745 = vmatpush2.msra.mxu0 0.0
    %1746 = vmatprep.subr.mxu0 0.0
    %1747 = vmatpush2.msra.mxu0 0.0
    %1748 = vmatprep.subr.mxu0 0.0
    %1749 = vmatpush2.msra.mxu0 0.0
    %1750 = vmatprep.subr.mxu0 0.0
    %1751 = vmatpush2.msra.mxu0 0.0
    %1752 = vmatprep.subr.mxu0 0.0
    %1753 = vmatpush2.msra.mxu0 0.0
    %1754 = vmatprep.subr.mxu0 0.0
    %1755 = vmatpush2.msra.mxu0 0.0
    %1756 = vmatprep.subr.mxu0 0.0
    %1757 = vmatpush2.msra.mxu0 0.0
    %1758 = vmatprep.subr.mxu0 0.0
    %1759 = vmatpush2.msra.mxu0 0.0
    %1760 = vmatprep.subr.mxu0 0.0
    %1761 = vmatpush2.msra.mxu0 0.0
    %1762 = vmatprep.subr.mxu0 0.0
    %1763 = vmatpush2.msra.mxu0 0.0
    %1764 = vmatprep.subr.mxu0 0.0
    %1765 = vmatpush2.msra.mxu0 0.0
    %1766 = vmatprep.subr.mxu0 0.0
    %1767 = vmatpush2.msra.mxu0 0.0
    %1768 = vmatprep.mubr.f32.mxu0 0.0
    %v1769 = vand.u32 %v1133, 4294901760
    %1770 = vmatmul.mubr.f32.gmra.mxu0 %v1769
    %v1771 = vpop.f32.mrf.mxu0
    %v1772 = vadd.f32 %v1685, %v1771
    %v1773 = vpop.f32.mrf.mxu0
    %1774 = vdwg.mxu0
    %v1776 = vsel %vm682, %v1772, 0
    %1778 = vmatprep.subr.mxu0 0.0
    %1779 = vmatpush1.msra.mxu0 0.0
    %1780 = vmatprep.subr.mxu0 0.0
    %1781 = vmatpush1.msra.mxu0 0.0
    %1782 = vmatprep.subr.mxu0 0.0
    %1783 = vmatpush1.msra.mxu0 0.0
    %1784 = vmatprep.subr.mxu0 0.0
    %1785 = vmatpush1.msra.mxu0 0.0
    %1786 = vmatprep.subr.mxu0 0.0
    %1787 = vmatpush1.msra.mxu0 0.0
    %1788 = vmatprep.subr.mxu0 0.0
    %1789 = vmatpush1.msra.mxu0 0.0
    %1790 = vmatprep.subr.mxu0 0.0
    %1791 = vmatpush1.msra.mxu0 0.0
    %1792 = vmatprep.subr.mxu0 0.0
    %1793 = vmatpush1.msra.mxu0 0.0
    %1794 = vmatprep.subr.mxu0 0.0
    %1795 = vmatpush1.msra.mxu0 0.0
    %1796 = vmatprep.subr.mxu0 0.0
    %1797 = vmatpush1.msra.mxu0 0.0
    %1798 = vmatprep.subr.mxu0 0.0
    %1799 = vmatpush1.msra.mxu0 0.0
    %1800 = vmatprep.subr.mxu0 0.0
    %1801 = vmatpush1.msra.mxu0 0.0
    %1802 = vmatprep.subr.mxu0 0.0
    %1803 = vmatpush1.msra.mxu0 0.0
    %1804 = vmatprep.subr.mxu0 0.0
    %1805 = vmatpush1.msra.mxu0 0.0
    %1806 = vmatprep.subr.mxu0 0.0
    %1807 = vmatpush1.msra.mxu0 0.0
    %1808 = vmatprep.subr.mxu0 0.0
    %v1809 = vand.u32 %v40, 4294901760
    %1810 = vmatpush1.msra.mxu0 %v1809
    %1811 = vmatprep.subr.mxu0 0.0
    %1812 = vmatpush2.msra.mxu0 0.0
    %1813 = vmatprep.subr.mxu0 0.0
    %1814 = vmatpush2.msra.mxu0 0.0
    %1815 = vmatprep.subr.mxu0 0.0
    %1816 = vmatpush2.msra.mxu0 0.0
    %1817 = vmatprep.subr.mxu0 0.0
    %1818 = vmatpush2.msra.mxu0 0.0
    %1819 = vmatprep.subr.mxu0 0.0
    %1820 = vmatpush2.msra.mxu0 0.0
    %1821 = vmatprep.subr.mxu0 0.0
    %1822 = vmatpush2.msra.mxu0 0.0
    %1823 = vmatprep.subr.mxu0 0.0
    %1824 = vmatpush2.msra.mxu0 0.0
    %1825 = vmatprep.subr.mxu0 0.0
    %1826 = vmatpush2.msra.mxu0 0.0
    %1827 = vmatprep.subr.mxu0 0.0
    %1828 = vmatpush2.msra.mxu0 0.0
    %1829 = vmatprep.subr.mxu0 0.0
    %1830 = vmatpush2.msra.mxu0 0.0
    %1831 = vmatprep.subr.mxu0 0.0
    %1832 = vmatpush2.msra.mxu0 0.0
    %1833 = vmatprep.subr.mxu0 0.0
    %1834 = vmatpush2.msra.mxu0 0.0
    %1835 = vmatprep.subr.mxu0 0.0
    %1836 = vmatpush2.msra.mxu0 0.0
    %1837 = vmatprep.subr.mxu0 0.0
    %1838 = vmatpush2.msra.mxu0 0.0
    %1839 = vmatprep.subr.mxu0 0.0
    %1840 = vmatpush2.msra.mxu0 0.0
    %1841 = vmatprep.subr.mxu0 0.0
    %1842 = vmatpush2.msra.mxu0 0.0
    %1843 = vmatprep.mubr.f32.mxu0 0.0
    %v1844 = vand.u32 %v1776, 4294901760
    %v1845 = vsub.f32 %v1776, %v1844
    %v1846 = vand.u32 %v1845, 4294901760
    %v1847 = vsub.f32 %v1845, %v1846
    %v1848 = vand.u32 %v1847, 4294901760
    %1849 = vmatmul.mubr.f32.gmra.mxu0 %v1848
    %v1850 = vpop.f32.mrf.mxu0
    %v1851 = vadd.f32 1e-05, %v1850
    %v1852 = vpop.f32.mrf.mxu0
    %1853 = vdwg.mxu0
    %1854 = vmatprep.subr.mxu0 0.0
    %1855 = vmatpush1.msra.mxu0 0.0
    %1856 = vmatprep.subr.mxu0 0.0
    %1857 = vmatpush1.msra.mxu0 0.0
    %1858 = vmatprep.subr.mxu0 0.0
    %1859 = vmatpush1.msra.mxu0 0.0
    %1860 = vmatprep.subr.mxu0 0.0
    %1861 = vmatpush1.msra.mxu0 0.0
    %1862 = vmatprep.subr.mxu0 0.0
    %1863 = vmatpush1.msra.mxu0 0.0
    %1864 = vmatprep.subr.mxu0 0.0
    %1865 = vmatpush1.msra.mxu0 0.0
    %1866 = vmatprep.subr.mxu0 0.0
    %1867 = vmatpush1.msra.mxu0 0.0
    %1868 = vmatprep.subr.mxu0 0.0
    %1869 = vmatpush1.msra.mxu0 0.0
    %1870 = vmatprep.subr.mxu0 0.0
    %1871 = vmatpush1.msra.mxu0 0.0
    %1872 = vmatprep.subr.mxu0 0.0
    %1873 = vmatpush1.msra.mxu0 0.0
    %1874 = vmatprep.subr.mxu0 0.0
    %1875 = vmatpush1.msra.mxu0 0.0
    %1876 = vmatprep.subr.mxu0 0.0
    %1877 = vmatpush1.msra.mxu0 0.0
    %1878 = vmatprep.subr.mxu0 0.0
    %1879 = vmatpush1.msra.mxu0 0.0
    %1880 = vmatprep.subr.mxu0 0.0
    %1881 = vmatpush1.msra.mxu0 0.0
    %1882 = vmatprep.subr.mxu0 0.0
    %1883 = vmatpush1.msra.mxu0 0.0
    %1884 = vmatprep.subr.mxu0 0.0
    %v1885 = vand.u32 %v40, 4294901760
    %v1886 = vsub.f32 %v40, %v1885
    %v1887 = vand.u32 %v1886, 4294901760
    %v1888 = vsub.f32 %v1886, %v1887
    %v1889 = vand.u32 %v1888, 4294901760
    %1890 = vmatpush1.msra.mxu0 %v1889
    %1891 = vmatprep.subr.mxu0 0.0
    %1892 = vmatpush2.msra.mxu0 0.0
    %1893 = vmatprep.subr.mxu0 0.0
    %1894 = vmatpush2.msra.mxu0 0.0
    %1895 = vmatprep.subr.mxu0 0.0
    %1896 = vmatpush2.msra.mxu0 0.0
    %1897 = vmatprep.subr.mxu0 0.0
    %1898 = vmatpush2.msra.mxu0 0.0
    %1899 = vmatprep.subr.mxu0 0.0
    %1900 = vmatpush2.msra.mxu0 0.0
    %1901 = vmatprep.subr.mxu0 0.0
    %1902 = vmatpush2.msra.mxu0 0.0
    %1903 = vmatprep.subr.mxu0 0.0
    %1904 = vmatpush2.msra.mxu0 0.0
    %1905 = vmatprep.subr.mxu0 0.0
    %1906 = vmatpush2.msra.mxu0 0.0
    %1907 = vmatprep.subr.mxu0 0.0
    %1908 = vmatpush2.msra.mxu0 0.0
    %1909 = vmatprep.subr.mxu0 0.0
    %1910 = vmatpush2.msra.mxu0 0.0
    %1911 = vmatprep.subr.mxu0 0.0
    %1912 = vmatpush2.msra.mxu0 0.0
    %1913 = vmatprep.subr.mxu0 0.0
    %1914 = vmatpush2.msra.mxu0 0.0
    %1915 = vmatprep.subr.mxu0 0.0
    %1916 = vmatpush2.msra.mxu0 0.0
    %1917 = vmatprep.subr.mxu0 0.0
    %1918 = vmatpush2.msra.mxu0 0.0
    %1919 = vmatprep.subr.mxu0 0.0
    %1920 = vmatpush2.msra.mxu0 0.0
    %1921 = vmatprep.subr.mxu0 0.0
    %1922 = vmatpush2.msra.mxu0 0.0
    %1923 = vmatprep.mubr.f32.mxu0 0.0
    %v1924 = vand.u32 %v1776, 4294901760
    %1925 = vmatmul.mubr.f32.gmra.mxu0 %v1924
    %v1926 = vpop.f32.mrf.mxu0
    %v1927 = vadd.f32 %v1851, %v1926
    %v1928 = vpop.f32.mrf.mxu0
    %1929 = vdwg.mxu0
    %1930 = vmatprep.subr.mxu0 0.0
    %1931 = vmatpush1.msra.mxu0 0.0
    %1932 = vmatprep.subr.mxu0 0.0
    %1933 = vmatpush1.msra.mxu0 0.0
    %1934 = vmatprep.subr.mxu0 0.0
    %1935 = vmatpush1.msra.mxu0 0.0
    %1936 = vmatprep.subr.mxu0 0.0
    %1937 = vmatpush1.msra.mxu0 0.0
    %1938 = vmatprep.subr.mxu0 0.0
    %1939 = vmatpush1.msra.mxu0 0.0
    %1940 = vmatprep.subr.mxu0 0.0
    %1941 = vmatpush1.msra.mxu0 0.0
    %1942 = vmatprep.subr.mxu0 0.0
    %1943 = vmatpush1.msra.mxu0 0.0
    %1944 = vmatprep.subr.mxu0 0.0
    %1945 = vmatpush1.msra.mxu0 0.0
    %1946 = vmatprep.subr.mxu0 0.0
    %1947 = vmatpush1.msra.mxu0 0.0
    %1948 = vmatprep.subr.mxu0 0.0
    %1949 = vmatpush1.msra.mxu0 0.0
    %1950 = vmatprep.subr.mxu0 0.0
    %1951 = vmatpush1.msra.mxu0 0.0
    %1952 = vmatprep.subr.mxu0 0.0
    %1953 = vmatpush1.msra.mxu0 0.0
    %1954 = vmatprep.subr.mxu0 0.0
    %1955 = vmatpush1.msra.mxu0 0.0
    %1956 = vmatprep.subr.mxu0 0.0
    %1957 = vmatpush1.msra.mxu0 0.0
    %1958 = vmatprep.subr.mxu0 0.0
    %1959 = vmatpush1.msra.mxu0 0.0
    %1960 = vmatprep.subr.mxu0 0.0
    %v1961 = vand.u32 %v40, 4294901760
    %v1962 = vsub.f32 %v40, %v1961
    %1963 = vmatpush1.msra.mxu0 %v1962
    %1964 = vmatprep.subr.mxu0 0.0
    %1965 = vmatpush2.msra.mxu0 0.0
    %1966 = vmatprep.subr.mxu0 0.0
    %1967 = vmatpush2.msra.mxu0 0.0
    %1968 = vmatprep.subr.mxu0 0.0
    %1969 = vmatpush2.msra.mxu0 0.0
    %1970 = vmatprep.subr.mxu0 0.0
    %1971 = vmatpush2.msra.mxu0 0.0
    %1972 = vmatprep.subr.mxu0 0.0
    %1973 = vmatpush2.msra.mxu0 0.0
    %1974 = vmatprep.subr.mxu0 0.0
    %1975 = vmatpush2.msra.mxu0 0.0
    %1976 = vmatprep.subr.mxu0 0.0
    %1977 = vmatpush2.msra.mxu0 0.0
    %1978 = vmatprep.subr.mxu0 0.0
    %1979 = vmatpush2.msra.mxu0 0.0
    %1980 = vmatprep.subr.mxu0 0.0
    %1981 = vmatpush2.msra.mxu0 0.0
    %1982 = vmatprep.subr.mxu0 0.0
    %1983 = vmatpush2.msra.mxu0 0.0
    %1984 = vmatprep.subr.mxu0 0.0
    %1985 = vmatpush2.msra.mxu0 0.0
    %1986 = vmatprep.subr.mxu0 0.0
    %1987 = vmatpush2.msra.mxu0 0.0
    %1988 = vmatprep.subr.mxu0 0.0
    %1989 = vmatpush2.msra.mxu0 0.0
    %1990 = vmatprep.subr.mxu0 0.0
    %1991 = vmatpush2.msra.mxu0 0.0
    %1992 = vmatprep.subr.mxu0 0.0
    %1993 = vmatpush2.msra.mxu0 0.0
    %1994 = vmatprep.subr.mxu0 0.0
    %1995 = vmatpush2.msra.mxu0 0.0
    %1996 = vmatprep.mubr.f32.mxu0 0.0
    %v1997 = vand.u32 %v1776, 4294901760
    %v1998 = vsub.f32 %v1776, %v1997
    %1999 = vmatmul.mubr.f32.gmra.mxu0 %v1998
    %v2000 = vpop.f32.mrf.mxu0
    %v2001 = vadd.f32 %v1927, %v2000
    %v2002 = vpop.f32.mrf.mxu0
    %2003 = vdwg.mxu0
    %2004 = vmatprep.subr.mxu0 0.0
    %2005 = vmatpush1.msra.mxu0 0.0
    %2006 = vmatprep.subr.mxu0 0.0
    %2007 = vmatpush1.msra.mxu0 0.0
    %2008 = vmatprep.subr.mxu0 0.0
    %2009 = vmatpush1.msra.mxu0 0.0
    %2010 = vmatprep.subr.mxu0 0.0
    %2011 = vmatpush1.msra.mxu0 0.0
    %2012 = vmatprep.subr.mxu0 0.0
    %2013 = vmatpush1.msra.mxu0 0.0
    %2014 = vmatprep.subr.mxu0 0.0
    %2015 = vmatpush1.msra.mxu0 0.0
    %2016 = vmatprep.subr.mxu0 0.0
    %2017 = vmatpush1.msra.mxu0 0.0
    %2018 = vmatprep.subr.mxu0 0.0
    %2019 = vmatpush1.msra.mxu0 0.0
    %2020 = vmatprep.subr.mxu0 0.0
    %2021 = vmatpush1.msra.mxu0 0.0
    %2022 = vmatprep.subr.mxu0 0.0
    %2023 = vmatpush1.msra.mxu0 0.0
    %2024 = vmatprep.subr.mxu0 0.0
    %2025 = vmatpush1.msra.mxu0 0.0
    %2026 = vmatprep.subr.mxu0 0.0
    %2027 = vmatpush1.msra.mxu0 0.0
    %2028 = vmatprep.subr.mxu0 0.0
    %2029 = vmatpush1.msra.mxu0 0.0
    %2030 = vmatprep.subr.mxu0 0.0
    %2031 = vmatpush1.msra.mxu0 0.0
    %2032 = vmatprep.subr.mxu0 0.0
    %2033 = vmatpush1.msra.mxu0 0.0
    %2034 = vmatprep.subr.mxu0 0.0
    %v2035 = vand.u32 %v40, 4294901760
    %2036 = vmatpush1.msra.mxu0 %v2035
    %2037 = vmatprep.subr.mxu0 0.0
    %2038 = vmatpush2.msra.mxu0 0.0
    %2039 = vmatprep.subr.mxu0 0.0
    %2040 = vmatpush2.msra.mxu0 0.0
    %2041 = vmatprep.subr.mxu0 0.0
    %2042 = vmatpush2.msra.mxu0 0.0
    %2043 = vmatprep.subr.mxu0 0.0
    %2044 = vmatpush2.msra.mxu0 0.0
    %2045 = vmatprep.subr.mxu0 0.0
    %2046 = vmatpush2.msra.mxu0 0.0
    %2047 = vmatprep.subr.mxu0 0.0
    %2048 = vmatpush2.msra.mxu0 0.0
    %2049 = vmatprep.subr.mxu0 0.0
    %2050 = vmatpush2.msra.mxu0 0.0
    %2051 = vmatprep.subr.mxu0 0.0
    %2052 = vmatpush2.msra.mxu0 0.0
    %2053 = vmatprep.subr.mxu0 0.0
    %2054 = vmatpush2.msra.mxu0 0.0
    %2055 = vmatprep.subr.mxu0 0.0
    %2056 = vmatpush2.msra.mxu0 0.0
    %2057 = vmatprep.subr.mxu0 0.0
    %2058 = vmatpush2.msra.mxu0 0.0
    %2059 = vmatprep.subr.mxu0 0.0
    %2060 = vmatpush2.msra.mxu0 0.0
    %2061 = vmatprep.subr.mxu0 0.0
    %2062 = vmatpush2.msra.mxu0 0.0
    %2063 = vmatprep.subr.mxu0 0.0
    %2064 = vmatpush2.msra.mxu0 0.0
    %2065 = vmatprep.subr.mxu0 0.0
    %2066 = vmatpush2.msra.mxu0 0.0
    %2067 = vmatprep.subr.mxu0 0.0
    %2068 = vmatpush2.msra.mxu0 0.0
    %2069 = vmatprep.mubr.f32.mxu0 0.0
    %v2070 = vand.u32 %v1776, 4294901760
    %v2071 = vsub.f32 %v1776, %v2070
    %v2072 = vand.u32 %v2071, 4294901760
    %2073 = vmatmul.mubr.f32.gmra.mxu0 %v2072
    %v2074 = vpop.f32.mrf.mxu0
    %v2075 = vadd.f32 %v2001, %v2074
    %v2076 = vpop.f32.mrf.mxu0
    %2077 = vdwg.mxu0
    %2078 = vmatprep.subr.mxu0 0.0
    %2079 = vmatpush1.msra.mxu0 0.0
    %2080 = vmatprep.subr.mxu0 0.0
    %2081 = vmatpush1.msra.mxu0 0.0
    %2082 = vmatprep.subr.mxu0 0.0
    %2083 = vmatpush1.msra.mxu0 0.0
    %2084 = vmatprep.subr.mxu0 0.0
    %2085 = vmatpush1.msra.mxu0 0.0
    %2086 = vmatprep.subr.mxu0 0.0
    %2087 = vmatpush1.msra.mxu0 0.0
    %2088 = vmatprep.subr.mxu0 0.0
    %2089 = vmatpush1.msra.mxu0 0.0
    %2090 = vmatprep.subr.mxu0 0.0
    %2091 = vmatpush1.msra.mxu0 0.0
    %2092 = vmatprep.subr.mxu0 0.0
    %2093 = vmatpush1.msra.mxu0 0.0
    %2094 = vmatprep.subr.mxu0 0.0
    %2095 = vmatpush1.msra.mxu0 0.0
    %2096 = vmatprep.subr.mxu0 0.0
    %2097 = vmatpush1.msra.mxu0 0.0
    %2098 = vmatprep.subr.mxu0 0.0
    %2099 = vmatpush1.msra.mxu0 0.0
    %2100 = vmatprep.subr.mxu0 0.0
    %2101 = vmatpush1.msra.mxu0 0.0
    %2102 = vmatprep.subr.mxu0 0.0
    %2103 = vmatpush1.msra.mxu0 0.0
    %2104 = vmatprep.subr.mxu0 0.0
    %2105 = vmatpush1.msra.mxu0 0.0
    %2106 = vmatprep.subr.mxu0 0.0
    %2107 = vmatpush1.msra.mxu0 0.0
    %2108 = vmatprep.subr.mxu0 0.0
    %v2109 = vand.u32 %v40, 4294901760
    %v2110 = vsub.f32 %v40, %v2109
    %v2111 = vand.u32 %v2110, 4294901760
    %2112 = vmatpush1.msra.mxu0 %v2111
    %2113 = vmatprep.subr.mxu0 0.0
    %2114 = vmatpush2.msra.mxu0 0.0
    %2115 = vmatprep.subr.mxu0 0.0
    %2116 = vmatpush2.msra.mxu0 0.0
    %2117 = vmatprep.subr.mxu0 0.0
    %2118 = vmatpush2.msra.mxu0 0.0
    %2119 = vmatprep.subr.mxu0 0.0
    %2120 = vmatpush2.msra.mxu0 0.0
    %2121 = vmatprep.subr.mxu0 0.0
    %2122 = vmatpush2.msra.mxu0 0.0
    %2123 = vmatprep.subr.mxu0 0.0
    %2124 = vmatpush2.msra.mxu0 0.0
    %2125 = vmatprep.subr.mxu0 0.0
    %2126 = vmatpush2.msra.mxu0 0.0
    %2127 = vmatprep.subr.mxu0 0.0
    %2128 = vmatpush2.msra.mxu0 0.0
    %2129 = vmatprep.subr.mxu0 0.0
    %2130 = vmatpush2.msra.mxu0 0.0
    %2131 = vmatprep.subr.mxu0 0.0
    %2132 = vmatpush2.msra.mxu0 0.0
    %2133 = vmatprep.subr.mxu0 0.0
    %2134 = vmatpush2.msra.mxu0 0.0
    %2135 = vmatprep.subr.mxu0 0.0
    %2136 = vmatpush2.msra.mxu0 0.0
    %2137 = vmatprep.subr.mxu0 0.0
    %2138 = vmatpush2.msra.mxu0 0.0
    %2139 = vmatprep.subr.mxu0 0.0
    %2140 = vmatpush2.msra.mxu0 0.0
    %2141 = vmatprep.subr.mxu0 0.0
    %2142 = vmatpush2.msra.mxu0 0.0
    %2143 = vmatprep.subr.mxu0 0.0
    %2144 = vmatpush2.msra.mxu0 0.0
    %2145 = vmatprep.mubr.f32.mxu0 0.0
    %v2146 = vand.u32 %v1776, 4294901760
    %2147 = vmatmul.mubr.f32.gmra.mxu0 %v2146
    %v2148 = vpop.f32.mrf.mxu0
    %v2149 = vadd.f32 %v2075, %v2148
    %v2150 = vpop.f32.mrf.mxu0
    %2151 = vdwg.mxu0
    %2152 = vmatprep.subr.mxu0 0.0
    %2153 = vmatpush1.msra.mxu0 0.0
    %2154 = vmatprep.subr.mxu0 0.0
    %2155 = vmatpush1.msra.mxu0 0.0
    %2156 = vmatprep.subr.mxu0 0.0
    %2157 = vmatpush1.msra.mxu0 0.0
    %2158 = vmatprep.subr.mxu0 0.0
    %2159 = vmatpush1.msra.mxu0 0.0
    %2160 = vmatprep.subr.mxu0 0.0
    %2161 = vmatpush1.msra.mxu0 0.0
    %2162 = vmatprep.subr.mxu0 0.0
    %2163 = vmatpush1.msra.mxu0 0.0
    %2164 = vmatprep.subr.mxu0 0.0
    %2165 = vmatpush1.msra.mxu0 0.0
    %2166 = vmatprep.subr.mxu0 0.0
    %2167 = vmatpush1.msra.mxu0 0.0
    %2168 = vmatprep.subr.mxu0 0.0
    %2169 = vmatpush1.msra.mxu0 0.0
    %2170 = vmatprep.subr.mxu0 0.0
    %2171 = vmatpush1.msra.mxu0 0.0
    %2172 = vmatprep.subr.mxu0 0.0
    %2173 = vmatpush1.msra.mxu0 0.0
    %2174 = vmatprep.subr.mxu0 0.0
    %2175 = vmatpush1.msra.mxu0 0.0
    %2176 = vmatprep.subr.mxu0 0.0
    %2177 = vmatpush1.msra.mxu0 0.0
    %2178 = vmatprep.subr.mxu0 0.0
    %2179 = vmatpush1.msra.mxu0 0.0
    %2180 = vmatprep.subr.mxu0 0.0
    %2181 = vmatpush1.msra.mxu0 0.0
    %2182 = vmatprep.subr.mxu0 0.0
    %v2183 = vand.u32 %v40, 4294901760
    %2184 = vmatpush1.msra.mxu0 %v2183
    %2185 = vmatprep.subr.mxu0 0.0
    %2186 = vmatpush2.msra.mxu0 0.0
    %2187 = vmatprep.subr.mxu0 0.0
    %2188 = vmatpush2.msra.mxu0 0.0
    %2189 = vmatprep.subr.mxu0 0.0
    %2190 = vmatpush2.msra.mxu0 0.0
    %2191 = vmatprep.subr.mxu0 0.0
    %2192 = vmatpush2.msra.mxu0 0.0
    %2193 = vmatprep.subr.mxu0 0.0
    %2194 = vmatpush2.msra.mxu0 0.0
    %2195 = vmatprep.subr.mxu0 0.0
    %2196 = vmatpush2.msra.mxu0 0.0
    %2197 = vmatprep.subr.mxu0 0.0
    %2198 = vmatpush2.msra.mxu0 0.0
    %2199 = vmatprep.subr.mxu0 0.0
    %2200 = vmatpush2.msra.mxu0 0.0
    %2201 = vmatprep.subr.mxu0 0.0
    %2202 = vmatpush2.msra.mxu0 0.0
    %2203 = vmatprep.subr.mxu0 0.0
    %2204 = vmatpush2.msra.mxu0 0.0
    %2205 = vmatprep.subr.mxu0 0.0
    %2206 = vmatpush2.msra.mxu0 0.0
    %2207 = vmatprep.subr.mxu0 0.0
    %2208 = vmatpush2.msra.mxu0 0.0
    %2209 = vmatprep.subr.mxu0 0.0
    %2210 = vmatpush2.msra.mxu0 0.0
    %2211 = vmatprep.subr.mxu0 0.0
    %2212 = vmatpush2.msra.mxu0 0.0
    %2213 = vmatprep.subr.mxu0 0.0
    %2214 = vmatpush2.msra.mxu0 0.0
    %2215 = vmatprep.subr.mxu0 0.0
    %2216 = vmatpush2.msra.mxu0 0.0
    %2217 = vmatprep.mubr.f32.mxu0 0.0
    %v2218 = vand.u32 %v1776, 4294901760
    %2219 = vmatmul.mubr.f32.gmra.mxu0 %v2218
    %v2220 = vpop.f32.mrf.mxu0
    %v2221 = vadd.f32 %v2149, %v2220
    %v2222 = vpop.f32.mrf.mxu0
    %2223 = vdwg.mxu0
    %v2224 = vrsqrt.pop %v2221
    %v2225 = vmul.f32 %v1132, %v2224
    %v2227 = vlaneseq
    %v2228 = vshrl.u32 %v2227, 7
    %v2229 = vsub.s32 0, %v2228
    %v2230 = vrot.slane %v22, %v2229
    %v2232 = vmul.f32 %v2225, %v2230
    %v2234 = vlaneseq
    %v2235 = vshrl.u32 %v2234, 7
    %v2236 = vsub.s32 0, %v2235
    %v2237 = vrot.slane %v23, %v2236
    %v2239 = vadd.f32 %v2232, %v2237
    %2240 = vst [vmem:[#allocation2] sm:$0xff] %v2239
    // Predicated region
    $region22: #{tpu_custom_call.1} parent=1 // pred_check
      _
    $region23: #{tpu_custom_call.1} parent=1 // pred_check_branch
      %2242 = sbr.rel (0) target = $region25
    $region24: #{tpu_custom_call.1} parent=1 // pred_region
      %s2244 = ssub.s32 128, 128
      %2245 = vsyncadd [#allocation3], %s2244
      %s2247 = sshll.u32 [#allocation2], 4
      %s2248 = int_to_ptr.vmem [resolvable:$true] %s2247
      %2250 = dma.vmem_to_hbm [thread:$0]  %s2248, 128, %s5, [#allocation3]
    $region25: #{tpu_custom_call.1} parent=1 // pred_fallthru
      _
    // Predicated region
    $region26: #{tpu_custom_call.1} parent=1 // pred_check
      _
    $region27: #{tpu_custom_call.1} parent=1 // pred_check_branch
      %2252 = sbr.rel (0) target = $region29
    $region28: #{tpu_custom_call.1} parent=1 // pred_region
      %2253 = dma.done [#allocation3], 128
    $region29: #{tpu_custom_call.1} parent=1 // pred_fallthru
      _
    %2254 = vsyncpa [#allocation3], 1

</llo_original>
